<compile_context>
chip_gen: v6e
topology: v6e:2x2x1
jax: 0.10.0
libtpu: 0.0.40
codegen_flags: <defaults>
</compile_context>

<pallas_src>
import functools

import jax
import jax.numpy as jnp
from jax.experimental import pallas as pl
from jax.experimental.pallas import tpu as pltpu


# ----------------------------------------------------------------------------
# Kernels
# ----------------------------------------------------------------------------
def _make_conv_kernels(KH, KW, W, HW):
    """Returns (stats_kernel, bn_relu_kernel); both share the direct-conv accumulator."""
    pad_w = (KW - 1) // 2

    def conv_acc(x_ref, w_ref, m_ref):
        # x_ref: (1, Cin, P)        flat zero-padded image, P = HW + (KH-1)*W + (KW-1)
        # w_ref: (KH*KW, Cout, Cin) conv weight per tap
        # m_ref: (KW, HW)           width-boundary masks (1.0/0.0), depend on kw only
        xf = x_ref[0]                            # (Cin, P)
        m = m_ref[...]                           # (KW, HW)
        acc = None
        for kh in range(KH):
            for kw in range(KW):
                c = kh * W + kw                  # static lane offset of this tap
                xt = xf[:, c:c + HW]             # (Cin, HW)
                if kw != pad_w:                  # zero columns that wrapped across rows
                    xt = xt * m[kw:kw + 1, :]
                tap = jnp.dot(w_ref[kh * KW + kw], xt,
                              preferred_element_type=jnp.float32)   # (Cout, HW)
                acc = tap if acc is None else acc + tap
        return acc                               # (Cout, HW) float32

    def conv_stats_kernel(x_ref, w_ref, m_ref, s_ref):
        # Pass 1: per-image per-channel [sum, sum-of-squares]; conv output stays in VMEM.
        acc = conv_acc(x_ref, w_ref, m_ref)
        s_ref[0, 0] = jnp.sum(acc, axis=1, keepdims=True)           # (Cout, 1)
        s_ref[0, 1] = jnp.sum(acc * acc, axis=1, keepdims=True)     # (Cout, 1)

    def conv_bn_relu_kernel(x_ref, w_ref, m_ref, p_ref, o_ref):
        # Pass 2: conv (recomputed) + folded BN affine + ReLU, lane-dense output.
        acc = conv_acc(x_ref, w_ref, m_ref)
        y = acc * p_ref[0] + p_ref[1]            # (Cout, HW)*(Cout,1) + (Cout,1)
        o_ref[0] = jnp.maximum(y, 0.0).astype(o_ref.dtype)

    return conv_stats_kernel, conv_bn_relu_kernel


# ----------------------------------------------------------------------------
# Wrapper
# ----------------------------------------------------------------------------
@functools.partial(jax.jit, static_argnames=("stride", "padding", "matmul_dtype"))
def conv_block_forward(x, weight, bias, gamma, beta, *, stride=1, padding=1,
                       matmul_dtype=jnp.bfloat16):
    """x: (N, Cin, H, W) f32;  weight: (Cout, Cin, KH, KW);  bias/gamma/beta: (Cout,).

    Supported config: stride=1 and "same" zero padding of an odd kernel
    (padding == (K-1)//2).  matmul_dtype=bfloat16 (default) halves the dominant HBM
    stream; MXU products stay exact and accumulation + BN epilogue stay in float32.
    """
    N, Cin, H, W = x.shape
    Cout, Cin_w, KH, KW = weight.shape
    assert Cin_w == Cin
    pad_h, pad_w = (KH - 1) // 2, (KW - 1) // 2
    if stride != 1 or KH % 2 == 0 or KW % 2 == 0 or padding != pad_h or pad_h != pad_w:
        # TODO(synk): general stride/padding needs an im2col or strided-gather path.
        raise NotImplementedError("conv_block_forward supports stride=1, 'same' padding")

    HW = H * W
    M = N * HW
    halo = pad_h * W + pad_w                     # flat halo on each side
    P = HW + 2 * halo
    cdt = jnp.dtype(matmul_dtype)

    # --- cheap XLA-side prep: flat zero-padded input, per-tap weights, edge masks ----
    x_fp = jnp.pad(x.reshape(N, Cin, HW), ((0, 0), (0, 0), (halo, halo))).astype(cdt)
    w_taps = jnp.transpose(weight, (2, 3, 0, 1)).reshape(KH * KW, Cout, Cin).astype(cdt)
    w_pos = jnp.arange(HW, dtype=jnp.int32) % W
    mask = jnp.stack(
        [((w_pos + (kw - pad_w)) >= 0) & ((w_pos + (kw - pad_w)) < W)
         for kw in range(KW)], axis=0).astype(cdt)                   # (KW, HW)
    # Conv bias is dropped on purpose: training-mode BN subtracts the per-channel mean,
    # which cancels a per-channel constant exactly (and conditions the variance better).
    del bias

    stats_kernel, bn_relu_kernel = _make_conv_kernels(KH, KW, W, HW)

    grid = (N,)                                  # >= 2 steps keeps both v7x TCs busy
    x_spec = pl.BlockSpec((1, Cin, P), lambda n: (n, 0, 0))
    w_spec = pl.BlockSpec((KH * KW, Cout, Cin), lambda n: (0, 0, 0))
    m_spec = pl.BlockSpec((KW, HW), lambda n: (0, 0))
    cparams = pltpu.CompilerParams(dimension_semantics=("parallel",))

    conv_flops = 2 * M * Cin * KH * KW * Cout
    in_bytes = (x_fp.size + w_taps.size + mask.size) * cdt.itemsize

    # ---- pass 1: conv (VMEM-resident) -> per-image BN partial statistics ----
    part = pl.pallas_call(
        stats_kernel,
        out_shape=jax.ShapeDtypeStruct((N, 2, Cout, 1), jnp.float32),
        grid=grid,
        in_specs=[x_spec, w_spec, m_spec],
        out_specs=pl.BlockSpec((1, 2, Cout, 1), lambda n: (n, 0, 0, 0)),
        compiler_params=cparams,
        cost_estimate=pl.CostEstimate(flops=conv_flops, transcendentals=0,
                                      bytes_accessed=in_bytes + N * 2 * Cout * 4),
    )(x_fp, w_taps, mask)

    # ---- tiny global reduction + BN affine folding (2*Cout scalars, XLA) ----
    sums = jnp.sum(part, axis=0)[:, :, 0]        # (2, Cout)
    mean = sums[0] / M
    var = sums[1] / M - mean * mean              # biased variance (training-mode BN)
    inv_std = jax.lax.rsqrt(var + 1e-5)
    scale = gamma.astype(jnp.float32) * inv_std
    shift = beta.astype(jnp.float32) - mean * scale
    bn_params = jnp.stack([scale, shift], axis=0).reshape(2, Cout, 1)

    # ---- pass 2: fused conv + BN affine + ReLU, lane-dense (N, Cout, HW) output ----
    out = pl.pallas_call(
        bn_relu_kernel,
        out_shape=jax.ShapeDtypeStruct((N, Cout, HW), jnp.float32),
        grid=grid,
        in_specs=[x_spec, w_spec, m_spec,
                  pl.BlockSpec((2, Cout, 1), lambda n: (0, 0, 0))],
        out_specs=pl.BlockSpec((1, Cout, HW), lambda n: (n, 0, 0)),
        compiler_params=cparams,
        cost_estimate=pl.CostEstimate(flops=conv_flops + 3 * M * Cout, transcendentals=0,
                                      bytes_accessed=in_bytes + 2 * Cout * 4
                                      + N * Cout * HW * 4),
    )(x_fp, w_taps, mask, bn_params)

    # (N, Cout, HW) reshapes straight to NCHW -- no transpose needed.
    return out.reshape(N, Cout, H, W)


# ----------------------------------------------------------------------------
# Pure-JAX reference (for correctness check)
# ----------------------------------------------------------------------------
def conv_block_reference(x, weight, bias, gamma, beta, *, stride=1, padding=1):
    y = jax.lax.conv_general_dilated(
        x, weight, window_strides=(stride, stride),
        padding=[(padding, padding), (padding, padding)],
        dimension_numbers=("NCHW", "OIHW", "NCHW"))
    y = y + bias.reshape(1, -1, 1, 1)
    mean = jnp.mean(y, axis=(0, 2, 3), keepdims=True)
    var = jnp.mean((y - mean) ** 2, axis=(0, 2, 3), keepdims=True)
    y = (y - mean) * jax.lax.rsqrt(var + 1e-5)
    y = y * gamma.reshape(1, -1, 1, 1) + beta.reshape(1, -1, 1, 1)
    return jnp.maximum(y, 0.0)


if __name__ == "__main__":
    # conv_block(in_channels=4, out_channels=8, kernel_size=3, stride=1, padding=1)
    N, Cin, H, W = 2, 4, 16, 16
    Cout, KH, KW = 8, 3, 3

    key = jax.random.PRNGKey(0)
    kx, kw_, kb, kg, kbe = jax.random.split(key, 5)

    x = jax.random.normal(kx, (N, Cin, H, W), dtype=jnp.float32)
    weight = jax.random.normal(kw_, (Cout, Cin, KH, KW), dtype=jnp.float32) * 0.1
    bias = jax.random.normal(kb, (Cout,), dtype=jnp.float32) * 0.1
    gamma = 1.0 + 0.1 * jax.random.normal(kg, (Cout,), dtype=jnp.float32)
    beta = 0.1 * jax.random.normal(kbe, (Cout,), dtype=jnp.float32)

    # 1) Exact-numerics path (f32 operands) against the f32 reference.
    out_f32 = conv_block_forward(x, weight, bias, gamma, beta, stride=1, padding=1,
                                 matmul_dtype=jnp.float32)
    out_f32 = jax.block_until_ready(out_f32)
    ref = conv_block_reference(x, weight, bias, gamma, beta, stride=1, padding=1)
    assert out_f32.shape == (N, Cout, H, W), out_f32.shape
    assert jnp.allclose(out_f32, ref, atol=1e-4, rtol=1e-4), \
        float(jnp.max(jnp.abs(out_f32 - ref)))

    # 2) Default fast path (bf16 operands, f32 accumulation).  MXU bf16 products are
    #    exact, so it matches the f32 reference evaluated on bf16-rounded conv inputs.
    out_bf16 = conv_block_forward(x, weight, bias, gamma, beta, stride=1, padding=1)
    out_bf16 = jax.block_until_ready(out_bf16)
    x_r = x.astype(jnp.bfloat16).astype(jnp.float32)
    w_r = weight.astype(jnp.bfloat16).astype(jnp.float32)
    ref_r = conv_block_reference(x_r, w_r, bias, gamma, beta, stride=1, padding=1)
    assert jnp.allclose(out_bf16, ref_r, atol=5e-3, rtol=5e-3), \
        float(jnp.max(jnp.abs(out_bf16 - ref_r)))

    print("KERNEL_OK")
</pallas_src>

<mosaic_0001>
module attributes {stable_mosaic.version = 11 : i64} {
  func.func @conv_bn_relu_kernel(%arg0: i32, %arg1: memref<1x4x290xf32, #tpu.memory_space<vmem>>, %arg2: memref<9x8x4xf32, #tpu.memory_space<vmem>>, %arg3: memref<3x256xf32, #tpu.memory_space<vmem>>, %arg4: memref<2x8x1xf32, #tpu.memory_space<vmem>>, %arg5: memref<1x8x256xf32, #tpu.memory_space<vmem>>) attributes {dimension_semantics = [#tpu.dimension_semantics<parallel>], iteration_bounds = array<i64: 2>, scalar_prefetch = 0 : i64, scratch_operands = 0 : i64, tpu.core_type = #tpu.core_type<tc>, window_params = [{transform_indices = @transform_0, window_bounds = array<i64: 1, 4, 290>}, {pipeline_mode = #tpu.pipeline_mode<synchronous>, transform_indices = @transform_1, window_bounds = array<i64: 9, 8, 4>}, {pipeline_mode = #tpu.pipeline_mode<synchronous>, transform_indices = @transform_2, window_bounds = array<i64: 3, 256>}, {pipeline_mode = #tpu.pipeline_mode<synchronous>, transform_indices = @transform_3, window_bounds = array<i64: 2, 8, 1>}, {transform_indices = @transform_4, window_bounds = array<i64: 1, 8, 256>}]} {
    %c0 = arith.constant 0 : index
    %c0_0 = arith.constant 0 : index
    %c0_1 = arith.constant 0 : index
    %0 = vector.load %arg1[%c0, %c0_0, %c0_1] : memref<1x4x290xf32, #tpu.memory_space<vmem>>, vector<1x4x290xf32>
    %1 = vector.shape_cast %0 : vector<1x4x290xf32> to vector<4x290xf32>
    %c0_2 = arith.constant 0 : index
    %c0_3 = arith.constant 0 : index
    %2 = vector.load %arg3[%c0_2, %c0_3] : memref<3x256xf32, #tpu.memory_space<vmem>>, vector<3x256xf32>
    %3 = vector.extract_strided_slice %1 {offsets = [0, 0], sizes = [4, 256], strides = [1, 1]} : vector<4x290xf32> to vector<4x256xf32>
    %4 = vector.extract_strided_slice %2 {offsets = [0, 0], sizes = [1, 256], strides = [1, 1]} : vector<3x256xf32> to vector<1x256xf32>
    %5 = vector.broadcast %4 : vector<1x256xf32> to vector<4x256xf32>
    %6 = arith.mulf %3, %5 : vector<4x256xf32>
    %c0_4 = arith.constant 0 : index
    %c0_5 = arith.constant 0 : index
    %c0_6 = arith.constant 0 : index
    %7 = vector.load %arg2[%c0_4, %c0_5, %c0_6] : memref<9x8x4xf32, #tpu.memory_space<vmem>>, vector<1x8x4xf32>
    %8 = vector.shape_cast %7 : vector<1x8x4xf32> to vector<8x4xf32>
    %cst = arith.constant dense<0.000000e+00> : vector<8x256xf32>
    %9 = tpu.matmul %8, %6, %cst {dimension_numbers = #tpu.dot_dimension_numbers<[1], [0], [0], [1], [0, 0, 1, 1], [], []>} : vector<8x4xf32>, vector<4x256xf32>, vector<8x256xf32> -> vector<8x256xf32>
    %10 = vector.extract_strided_slice %1 {offsets = [0, 1], sizes = [4, 256], strides = [1, 1]} : vector<4x290xf32> to vector<4x256xf32>
    %c1 = arith.constant 1 : index
    %c0_7 = arith.constant 0 : index
    %c0_8 = arith.constant 0 : index
    %11 = vector.load %arg2[%c1, %c0_7, %c0_8] : memref<9x8x4xf32, #tpu.memory_space<vmem>>, vector<1x8x4xf32>
    %12 = vector.shape_cast %11 : vector<1x8x4xf32> to vector<8x4xf32>
    %cst_9 = arith.constant dense<0.000000e+00> : vector<8x256xf32>
    %13 = tpu.matmul %12, %10, %cst_9 {dimension_numbers = #tpu.dot_dimension_numbers<[1], [0], [0], [1], [0, 0, 1, 1], [], []>} : vector<8x4xf32>, vector<4x256xf32>, vector<8x256xf32> -> vector<8x256xf32>
    %14 = arith.addf %9, %13 : vector<8x256xf32>
    %15 = vector.extract_strided_slice %1 {offsets = [0, 2], sizes = [4, 256], strides = [1, 1]} : vector<4x290xf32> to vector<4x256xf32>
    %16 = vector.extract_strided_slice %2 {offsets = [2, 0], sizes = [1, 256], strides = [1, 1]} : vector<3x256xf32> to vector<1x256xf32>
    %17 = vector.broadcast %16 : vector<1x256xf32> to vector<4x256xf32>
    %18 = arith.mulf %15, %17 : vector<4x256xf32>
    %c2 = arith.constant 2 : index
    %c0_10 = arith.constant 0 : index
    %c0_11 = arith.constant 0 : index
    %19 = vector.load %arg2[%c2, %c0_10, %c0_11] : memref<9x8x4xf32, #tpu.memory_space<vmem>>, vector<1x8x4xf32>
    %20 = vector.shape_cast %19 : vector<1x8x4xf32> to vector<8x4xf32>
    %cst_12 = arith.constant dense<0.000000e+00> : vector<8x256xf32>
    %21 = tpu.matmul %20, %18, %cst_12 {dimension_numbers = #tpu.dot_dimension_numbers<[1], [0], [0], [1], [0, 0, 1, 1], [], []>} : vector<8x4xf32>, vector<4x256xf32>, vector<8x256xf32> -> vector<8x256xf32>
    %22 = arith.addf %14, %21 : vector<8x256xf32>
    %23 = vector.extract_strided_slice %1 {offsets = [0, 16], sizes = [4, 256], strides = [1, 1]} : vector<4x290xf32> to vector<4x256xf32>
    %24 = vector.extract_strided_slice %2 {offsets = [0, 0], sizes = [1, 256], strides = [1, 1]} : vector<3x256xf32> to vector<1x256xf32>
    %25 = vector.broadcast %24 : vector<1x256xf32> to vector<4x256xf32>
    %26 = arith.mulf %23, %25 : vector<4x256xf32>
    %c3 = arith.constant 3 : index
    %c0_13 = arith.constant 0 : index
    %c0_14 = arith.constant 0 : index
    %27 = vector.load %arg2[%c3, %c0_13, %c0_14] : memref<9x8x4xf32, #tpu.memory_space<vmem>>, vector<1x8x4xf32>
    %28 = vector.shape_cast %27 : vector<1x8x4xf32> to vector<8x4xf32>
    %cst_15 = arith.constant dense<0.000000e+00> : vector<8x256xf32>
    %29 = tpu.matmul %28, %26, %cst_15 {dimension_numbers = #tpu.dot_dimension_numbers<[1], [0], [0], [1], [0, 0, 1, 1], [], []>} : vector<8x4xf32>, vector<4x256xf32>, vector<8x256xf32> -> vector<8x256xf32>
    %30 = arith.addf %22, %29 : vector<8x256xf32>
    %31 = vector.extract_strided_slice %1 {offsets = [0, 17], sizes = [4, 256], strides = [1, 1]} : vector<4x290xf32> to vector<4x256xf32>
    %c4 = arith.constant 4 : index
    %c0_16 = arith.constant 0 : index
    %c0_17 = arith.constant 0 : index
    %32 = vector.load %arg2[%c4, %c0_16, %c0_17] : memref<9x8x4xf32, #tpu.memory_space<vmem>>, vector<1x8x4xf32>
    %33 = vector.shape_cast %32 : vector<1x8x4xf32> to vector<8x4xf32>
    %cst_18 = arith.constant dense<0.000000e+00> : vector<8x256xf32>
    %34 = tpu.matmul %33, %31, %cst_18 {dimension_numbers = #tpu.dot_dimension_numbers<[1], [0], [0], [1], [0, 0, 1, 1], [], []>} : vector<8x4xf32>, vector<4x256xf32>, vector<8x256xf32> -> vector<8x256xf32>
    %35 = arith.addf %30, %34 : vector<8x256xf32>
    %36 = vector.extract_strided_slice %1 {offsets = [0, 18], sizes = [4, 256], strides = [1, 1]} : vector<4x290xf32> to vector<4x256xf32>
    %37 = vector.extract_strided_slice %2 {offsets = [2, 0], sizes = [1, 256], strides = [1, 1]} : vector<3x256xf32> to vector<1x256xf32>
    %38 = vector.broadcast %37 : vector<1x256xf32> to vector<4x256xf32>
    %39 = arith.mulf %36, %38 : vector<4x256xf32>
    %c5 = arith.constant 5 : index
    %c0_19 = arith.constant 0 : index
    %c0_20 = arith.constant 0 : index
    %40 = vector.load %arg2[%c5, %c0_19, %c0_20] : memref<9x8x4xf32, #tpu.memory_space<vmem>>, vector<1x8x4xf32>
    %41 = vector.shape_cast %40 : vector<1x8x4xf32> to vector<8x4xf32>
    %cst_21 = arith.constant dense<0.000000e+00> : vector<8x256xf32>
    %42 = tpu.matmul %41, %39, %cst_21 {dimension_numbers = #tpu.dot_dimension_numbers<[1], [0], [0], [1], [0, 0, 1, 1], [], []>} : vector<8x4xf32>, vector<4x256xf32>, vector<8x256xf32> -> vector<8x256xf32>
    %43 = arith.addf %35, %42 : vector<8x256xf32>
    %44 = vector.extract_strided_slice %1 {offsets = [0, 32], sizes = [4, 256], strides = [1, 1]} : vector<4x290xf32> to vector<4x256xf32>
    %45 = vector.extract_strided_slice %2 {offsets = [0, 0], sizes = [1, 256], strides = [1, 1]} : vector<3x256xf32> to vector<1x256xf32>
    %46 = vector.broadcast %45 : vector<1x256xf32> to vector<4x256xf32>
    %47 = arith.mulf %44, %46 : vector<4x256xf32>
    %c6 = arith.constant 6 : index
    %c0_22 = arith.constant 0 : index
    %c0_23 = arith.constant 0 : index
    %48 = vector.load %arg2[%c6, %c0_22, %c0_23] : memref<9x8x4xf32, #tpu.memory_space<vmem>>, vector<1x8x4xf32>
    %49 = vector.shape_cast %48 : vector<1x8x4xf32> to vector<8x4xf32>
    %cst_24 = arith.constant dense<0.000000e+00> : vector<8x256xf32>
    %50 = tpu.matmul %49, %47, %cst_24 {dimension_numbers = #tpu.dot_dimension_numbers<[1], [0], [0], [1], [0, 0, 1, 1], [], []>} : vector<8x4xf32>, vector<4x256xf32>, vector<8x256xf32> -> vector<8x256xf32>
    %51 = arith.addf %43, %50 : vector<8x256xf32>
    %52 = vector.extract_strided_slice %1 {offsets = [0, 33], sizes = [4, 256], strides = [1, 1]} : vector<4x290xf32> to vector<4x256xf32>
    %c7 = arith.constant 7 : index
    %c0_25 = arith.constant 0 : index
    %c0_26 = arith.constant 0 : index
    %53 = vector.load %arg2[%c7, %c0_25, %c0_26] : memref<9x8x4xf32, #tpu.memory_space<vmem>>, vector<1x8x4xf32>
    %54 = vector.shape_cast %53 : vector<1x8x4xf32> to vector<8x4xf32>
    %cst_27 = arith.constant dense<0.000000e+00> : vector<8x256xf32>
    %55 = tpu.matmul %54, %52, %cst_27 {dimension_numbers = #tpu.dot_dimension_numbers<[1], [0], [0], [1], [0, 0, 1, 1], [], []>} : vector<8x4xf32>, vector<4x256xf32>, vector<8x256xf32> -> vector<8x256xf32>
    %56 = arith.addf %51, %55 : vector<8x256xf32>
    %57 = vector.extract_strided_slice %1 {offsets = [0, 34], sizes = [4, 256], strides = [1, 1]} : vector<4x290xf32> to vector<4x256xf32>
    %58 = vector.extract_strided_slice %2 {offsets = [2, 0], sizes = [1, 256], strides = [1, 1]} : vector<3x256xf32> to vector<1x256xf32>
    %59 = vector.broadcast %58 : vector<1x256xf32> to vector<4x256xf32>
    %60 = arith.mulf %57, %59 : vector<4x256xf32>
    %c8 = arith.constant 8 : index
    %c0_28 = arith.constant 0 : index
    %c0_29 = arith.constant 0 : index
    %61 = vector.load %arg2[%c8, %c0_28, %c0_29] : memref<9x8x4xf32, #tpu.memory_space<vmem>>, vector<1x8x4xf32>
    %62 = vector.shape_cast %61 : vector<1x8x4xf32> to vector<8x4xf32>
    %cst_30 = arith.constant dense<0.000000e+00> : vector<8x256xf32>
    %63 = tpu.matmul %62, %60, %cst_30 {dimension_numbers = #tpu.dot_dimension_numbers<[1], [0], [0], [1], [0, 0, 1, 1], [], []>} : vector<8x4xf32>, vector<4x256xf32>, vector<8x256xf32> -> vector<8x256xf32>
    %64 = arith.addf %56, %63 : vector<8x256xf32>
    %c0_31 = arith.constant 0 : index
    %c0_32 = arith.constant 0 : index
    %c0_33 = arith.constant 0 : index
    %65 = vector.load %arg4[%c0_31, %c0_32, %c0_33] : memref<2x8x1xf32, #tpu.memory_space<vmem>>, vector<1x8x1xf32>
    %66 = vector.shape_cast %65 : vector<1x8x1xf32> to vector<8x1xf32>
    %67 = vector.broadcast %66 : vector<8x1xf32> to vector<8x256xf32>
    %68 = arith.mulf %64, %67 : vector<8x256xf32>
    %c1_34 = arith.constant 1 : index
    %c0_35 = arith.constant 0 : index
    %c0_36 = arith.constant 0 : index
    %69 = vector.load %arg4[%c1_34, %c0_35, %c0_36] : memref<2x8x1xf32, #tpu.memory_space<vmem>>, vector<1x8x1xf32>
    %70 = vector.shape_cast %69 : vector<1x8x1xf32> to vector<8x1xf32>
    %71 = vector.broadcast %70 : vector<8x1xf32> to vector<8x256xf32>
    %72 = arith.addf %68, %71 : vector<8x256xf32>
    %cst_37 = arith.constant 0.000000e+00 : f32
    %73 = vector.broadcast %cst_37 : f32 to vector<8x256xf32>
    %74 = arith.maximumf %72, %73 : vector<8x256xf32>
    %c0_38 = arith.constant 0 : index
    %c0_39 = arith.constant 0 : index
    %c0_40 = arith.constant 0 : index
    %75 = vector.load %arg5[%c0_38, %c0_39, %c0_40] : memref<1x8x256xf32, #tpu.memory_space<vmem>>, vector<1x8x256xf32>
    %76 = vector.shape_cast %75 : vector<1x8x256xf32> to vector<8x256xf32>
    %77 = vector.shape_cast %74 : vector<8x256xf32> to vector<1x8x256xf32>
    tpu.vector_store %arg5[%c0_38, %c0_39, %c0_40], %77 {strides = array<i32>} : memref<1x8x256xf32, #tpu.memory_space<vmem>>, vector<1x8x256xf32>,
    return
  }
  func.func @transform_0(%arg0: i32) -> (i32, i32, i32) {
    %c0_i32 = arith.constant 0 : i32
    %c0_i32_0 = arith.constant 0 : i32
    %c0_i32_1 = arith.constant 0 : i32
    return %arg0, %c0_i32, %c0_i32_0 : i32, i32, i32
  }
  func.func @transform_1(%arg0: i32) -> (i32, i32, i32) {
    %c0_i32 = arith.constant 0 : i32
    %c0_i32_0 = arith.constant 0 : i32
    %c0_i32_1 = arith.constant 0 : i32
    %c0_i32_2 = arith.constant 0 : i32
    return %c0_i32, %c0_i32_0, %c0_i32_1 : i32, i32, i32
  }
  func.func @transform_2(%arg0: i32) -> (i32, i32) {
    %c0_i32 = arith.constant 0 : i32
    %c0_i32_0 = arith.constant 0 : i32
    %c0_i32_1 = arith.constant 0 : i32
    return %c0_i32, %c0_i32_0 : i32, i32
  }
  func.func @transform_3(%arg0: i32) -> (i32, i32, i32) {
    %c0_i32 = arith.constant 0 : i32
    %c0_i32_0 = arith.constant 0 : i32
    %c0_i32_1 = arith.constant 0 : i32
    %c0_i32_2 = arith.constant 0 : i32
    return %c0_i32, %c0_i32_0, %c0_i32_1 : i32, i32, i32
  }
  func.func @transform_4(%arg0: i32) -> (i32, i32, i32) {
    %c0_i32 = arith.constant 0 : i32
    %c0_i32_0 = arith.constant 0 : i32
    %c0_i32_1 = arith.constant 0 : i32
    return %arg0, %c0_i32, %c0_i32_0 : i32, i32, i32
  }
}

module attributes {stable_mosaic.version = 11 : i64} {
  func.func @conv_stats_kernel(%arg0: i32, %arg1: memref<1x4x290xf32, #tpu.memory_space<vmem>>, %arg2: memref<9x8x4xf32, #tpu.memory_space<vmem>>, %arg3: memref<3x256xf32, #tpu.memory_space<vmem>>, %arg4: memref<1x2x8x1xf32, #tpu.memory_space<vmem>>) attributes {dimension_semantics = [#tpu.dimension_semantics<parallel>], iteration_bounds = array<i64: 2>, scalar_prefetch = 0 : i64, scratch_operands = 0 : i64, tpu.core_type = #tpu.core_type<tc>, window_params = [{transform_indices = @transform_0, window_bounds = array<i64: 1, 4, 290>}, {pipeline_mode = #tpu.pipeline_mode<synchronous>, transform_indices = @transform_1, window_bounds = array<i64: 9, 8, 4>}, {pipeline_mode = #tpu.pipeline_mode<synchronous>, transform_indices = @transform_2, window_bounds = array<i64: 3, 256>}, {transform_indices = @transform_3, window_bounds = array<i64: 1, 2, 8, 1>}]} {
    %c0 = arith.constant 0 : index
    %c0_0 = arith.constant 0 : index
    %c0_1 = arith.constant 0 : index
    %0 = vector.load %arg1[%c0, %c0_0, %c0_1] : memref<1x4x290xf32, #tpu.memory_space<vmem>>, vector<1x4x290xf32>
    %1 = vector.shape_cast %0 : vector<1x4x290xf32> to vector<4x290xf32>
    %c0_2 = arith.constant 0 : index
    %c0_3 = arith.constant 0 : index
    %2 = vector.load %arg3[%c0_2, %c0_3] : memref<3x256xf32, #tpu.memory_space<vmem>>, vector<3x256xf32>
    %3 = vector.extract_strided_slice %1 {offsets = [0, 0], sizes = [4, 256], strides = [1, 1]} : vector<4x290xf32> to vector<4x256xf32>
    %4 = vector.extract_strided_slice %2 {offsets = [0, 0], sizes = [1, 256], strides = [1, 1]} : vector<3x256xf32> to vector<1x256xf32>
    %5 = vector.broadcast %4 : vector<1x256xf32> to vector<4x256xf32>
    %6 = arith.mulf %3, %5 : vector<4x256xf32>
    %c0_4 = arith.constant 0 : index
    %c0_5 = arith.constant 0 : index
    %c0_6 = arith.constant 0 : index
    %7 = vector.load %arg2[%c0_4, %c0_5, %c0_6] : memref<9x8x4xf32, #tpu.memory_space<vmem>>, vector<1x8x4xf32>
    %8 = vector.shape_cast %7 : vector<1x8x4xf32> to vector<8x4xf32>
    %cst = arith.constant dense<0.000000e+00> : vector<8x256xf32>
    %9 = tpu.matmul %8, %6, %cst {dimension_numbers = #tpu.dot_dimension_numbers<[1], [0], [0], [1], [0, 0, 1, 1], [], []>} : vector<8x4xf32>, vector<4x256xf32>, vector<8x256xf32> -> vector<8x256xf32>
    %10 = vector.extract_strided_slice %1 {offsets = [0, 1], sizes = [4, 256], strides = [1, 1]} : vector<4x290xf32> to vector<4x256xf32>
    %c1 = arith.constant 1 : index
    %c0_7 = arith.constant 0 : index
    %c0_8 = arith.constant 0 : index
    %11 = vector.load %arg2[%c1, %c0_7, %c0_8] : memref<9x8x4xf32, #tpu.memory_space<vmem>>, vector<1x8x4xf32>
    %12 = vector.shape_cast %11 : vector<1x8x4xf32> to vector<8x4xf32>
    %cst_9 = arith.constant dense<0.000000e+00> : vector<8x256xf32>
    %13 = tpu.matmul %12, %10, %cst_9 {dimension_numbers = #tpu.dot_dimension_numbers<[1], [0], [0], [1], [0, 0, 1, 1], [], []>} : vector<8x4xf32>, vector<4x256xf32>, vector<8x256xf32> -> vector<8x256xf32>
    %14 = arith.addf %9, %13 : vector<8x256xf32>
    %15 = vector.extract_strided_slice %1 {offsets = [0, 2], sizes = [4, 256], strides = [1, 1]} : vector<4x290xf32> to vector<4x256xf32>
    %16 = vector.extract_strided_slice %2 {offsets = [2, 0], sizes = [1, 256], strides = [1, 1]} : vector<3x256xf32> to vector<1x256xf32>
    %17 = vector.broadcast %16 : vector<1x256xf32> to vector<4x256xf32>
    %18 = arith.mulf %15, %17 : vector<4x256xf32>
    %c2 = arith.constant 2 : index
    %c0_10 = arith.constant 0 : index
    %c0_11 = arith.constant 0 : index
    %19 = vector.load %arg2[%c2, %c0_10, %c0_11] : memref<9x8x4xf32, #tpu.memory_space<vmem>>, vector<1x8x4xf32>
    %20 = vector.shape_cast %19 : vector<1x8x4xf32> to vector<8x4xf32>
    %cst_12 = arith.constant dense<0.000000e+00> : vector<8x256xf32>
    %21 = tpu.matmul %20, %18, %cst_12 {dimension_numbers = #tpu.dot_dimension_numbers<[1], [0], [0], [1], [0, 0, 1, 1], [], []>} : vector<8x4xf32>, vector<4x256xf32>, vector<8x256xf32> -> vector<8x256xf32>
    %22 = arith.addf %14, %21 : vector<8x256xf32>
    %23 = vector.extract_strided_slice %1 {offsets = [0, 16], sizes = [4, 256], strides = [1, 1]} : vector<4x290xf32> to vector<4x256xf32>
    %24 = vector.extract_strided_slice %2 {offsets = [0, 0], sizes = [1, 256], strides = [1, 1]} : vector<3x256xf32> to vector<1x256xf32>
    %25 = vector.broadcast %24 : vector<1x256xf32> to vector<4x256xf32>
    %26 = arith.mulf %23, %25 : vector<4x256xf32>
    %c3 = arith.constant 3 : index
    %c0_13 = arith.constant 0 : index
    %c0_14 = arith.constant 0 : index
    %27 = vector.load %arg2[%c3, %c0_13, %c0_14] : memref<9x8x4xf32, #tpu.memory_space<vmem>>, vector<1x8x4xf32>
    %28 = vector.shape_cast %27 : vector<1x8x4xf32> to vector<8x4xf32>
    %cst_15 = arith.constant dense<0.000000e+00> : vector<8x256xf32>
    %29 = tpu.matmul %28, %26, %cst_15 {dimension_numbers = #tpu.dot_dimension_numbers<[1], [0], [0], [1], [0, 0, 1, 1], [], []>} : vector<8x4xf32>, vector<4x256xf32>, vector<8x256xf32> -> vector<8x256xf32>
    %30 = arith.addf %22, %29 : vector<8x256xf32>
    %31 = vector.extract_strided_slice %1 {offsets = [0, 17], sizes = [4, 256], strides = [1, 1]} : vector<4x290xf32> to vector<4x256xf32>
    %c4 = arith.constant 4 : index
    %c0_16 = arith.constant 0 : index
    %c0_17 = arith.constant 0 : index
    %32 = vector.load %arg2[%c4, %c0_16, %c0_17] : memref<9x8x4xf32, #tpu.memory_space<vmem>>, vector<1x8x4xf32>
    %33 = vector.shape_cast %32 : vector<1x8x4xf32> to vector<8x4xf32>
    %cst_18 = arith.constant dense<0.000000e+00> : vector<8x256xf32>
    %34 = tpu.matmul %33, %31, %cst_18 {dimension_numbers = #tpu.dot_dimension_numbers<[1], [0], [0], [1], [0, 0, 1, 1], [], []>} : vector<8x4xf32>, vector<4x256xf32>, vector<8x256xf32> -> vector<8x256xf32>
    %35 = arith.addf %30, %34 : vector<8x256xf32>
    %36 = vector.extract_strided_slice %1 {offsets = [0, 18], sizes = [4, 256], strides = [1, 1]} : vector<4x290xf32> to vector<4x256xf32>
    %37 = vector.extract_strided_slice %2 {offsets = [2, 0], sizes = [1, 256], strides = [1, 1]} : vector<3x256xf32> to vector<1x256xf32>
    %38 = vector.broadcast %37 : vector<1x256xf32> to vector<4x256xf32>
    %39 = arith.mulf %36, %38 : vector<4x256xf32>
    %c5 = arith.constant 5 : index
    %c0_19 = arith.constant 0 : index
    %c0_20 = arith.constant 0 : index
    %40 = vector.load %arg2[%c5, %c0_19, %c0_20] : memref<9x8x4xf32, #tpu.memory_space<vmem>>, vector<1x8x4xf32>
    %41 = vector.shape_cast %40 : vector<1x8x4xf32> to vector<8x4xf32>
    %cst_21 = arith.constant dense<0.000000e+00> : vector<8x256xf32>
    %42 = tpu.matmul %41, %39, %cst_21 {dimension_numbers = #tpu.dot_dimension_numbers<[1], [0], [0], [1], [0, 0, 1, 1], [], []>} : vector<8x4xf32>, vector<4x256xf32>, vector<8x256xf32> -> vector<8x256xf32>
    %43 = arith.addf %35, %42 : vector<8x256xf32>
    %44 = vector.extract_strided_slice %1 {offsets = [0, 32], sizes = [4, 256], strides = [1, 1]} : vector<4x290xf32> to vector<4x256xf32>
    %45 = vector.extract_strided_slice %2 {offsets = [0, 0], sizes = [1, 256], strides = [1, 1]} : vector<3x256xf32> to vector<1x256xf32>
    %46 = vector.broadcast %45 : vector<1x256xf32> to vector<4x256xf32>
    %47 = arith.mulf %44, %46 : vector<4x256xf32>
    %c6 = arith.constant 6 : index
    %c0_22 = arith.constant 0 : index
    %c0_23 = arith.constant 0 : index
    %48 = vector.load %arg2[%c6, %c0_22, %c0_23] : memref<9x8x4xf32, #tpu.memory_space<vmem>>, vector<1x8x4xf32>
    %49 = vector.shape_cast %48 : vector<1x8x4xf32> to vector<8x4xf32>
    %cst_24 = arith.constant dense<0.000000e+00> : vector<8x256xf32>
    %50 = tpu.matmul %49, %47, %cst_24 {dimension_numbers = #tpu.dot_dimension_numbers<[1], [0], [0], [1], [0, 0, 1, 1], [], []>} : vector<8x4xf32>, vector<4x256xf32>, vector<8x256xf32> -> vector<8x256xf32>
    %51 = arith.addf %43, %50 : vector<8x256xf32>
    %52 = vector.extract_strided_slice %1 {offsets = [0, 33], sizes = [4, 256], strides = [1, 1]} : vector<4x290xf32> to vector<4x256xf32>
    %c7 = arith.constant 7 : index
    %c0_25 = arith.constant 0 : index
    %c0_26 = arith.constant 0 : index
    %53 = vector.load %arg2[%c7, %c0_25, %c0_26] : memref<9x8x4xf32, #tpu.memory_space<vmem>>, vector<1x8x4xf32>
    %54 = vector.shape_cast %53 : vector<1x8x4xf32> to vector<8x4xf32>
    %cst_27 = arith.constant dense<0.000000e+00> : vector<8x256xf32>
    %55 = tpu.matmul %54, %52, %cst_27 {dimension_numbers = #tpu.dot_dimension_numbers<[1], [0], [0], [1], [0, 0, 1, 1], [], []>} : vector<8x4xf32>, vector<4x256xf32>, vector<8x256xf32> -> vector<8x256xf32>
    %56 = arith.addf %51, %55 : vector<8x256xf32>
    %57 = vector.extract_strided_slice %1 {offsets = [0, 34], sizes = [4, 256], strides = [1, 1]} : vector<4x290xf32> to vector<4x256xf32>
    %58 = vector.extract_strided_slice %2 {offsets = [2, 0], sizes = [1, 256], strides = [1, 1]} : vector<3x256xf32> to vector<1x256xf32>
    %59 = vector.broadcast %58 : vector<1x256xf32> to vector<4x256xf32>
    %60 = arith.mulf %57, %59 : vector<4x256xf32>
    %c8 = arith.constant 8 : index
    %c0_28 = arith.constant 0 : index
    %c0_29 = arith.constant 0 : index
    %61 = vector.load %arg2[%c8, %c0_28, %c0_29] : memref<9x8x4xf32, #tpu.memory_space<vmem>>, vector<1x8x4xf32>
    %62 = vector.shape_cast %61 : vector<1x8x4xf32> to vector<8x4xf32>
    %cst_30 = arith.constant dense<0.000000e+00> : vector<8x256xf32>
    %63 = tpu.matmul %62, %60, %cst_30 {dimension_numbers = #tpu.dot_dimension_numbers<[1], [0], [0], [1], [0, 0, 1, 1], [], []>} : vector<8x4xf32>, vector<4x256xf32>, vector<8x256xf32> -> vector<8x256xf32>
    %64 = arith.addf %56, %63 : vector<8x256xf32>
    %cst_31 = arith.constant dense<0.000000e+00> : vector<8xf32>
    %65 = vector.multi_reduction <add>, %64, %cst_31 [1] : vector<8x256xf32> to vector<8xf32>
    %66 = vector.shape_cast %65 : vector<8xf32> to vector<8x1xf32>
    %c0_32 = arith.constant 0 : index
    %c0_33 = arith.constant 0 : index
    %c0_34 = arith.constant 0 : index
    %c0_35 = arith.constant 0 : index
    %67 = vector.load %arg4[%c0_32, %c0_33, %c0_34, %c0_35] : memref<1x2x8x1xf32, #tpu.memory_space<vmem>>, vector<1x1x8x1xf32>
    %68 = vector.shape_cast %67 : vector<1x1x8x1xf32> to vector<8x1xf32>
    %69 = vector.shape_cast %66 : vector<8x1xf32> to vector<1x1x8x1xf32>
    tpu.vector_store %arg4[%c0_32, %c0_33, %c0_34, %c0_35], %69 {strides = array<i32>} : memref<1x2x8x1xf32, #tpu.memory_space<vmem>>, vector<1x1x8x1xf32>,
    %70 = arith.mulf %64, %64 : vector<8x256xf32>
    %cst_36 = arith.constant dense<0.000000e+00> : vector<8xf32>
    %71 = vector.multi_reduction <add>, %70, %cst_36 [1] : vector<8x256xf32> to vector<8xf32>
    %72 = vector.shape_cast %71 : vector<8xf32> to vector<8x1xf32>
    %c0_37 = arith.constant 0 : index
    %c1_38 = arith.constant 1 : index
    %c0_39 = arith.constant 0 : index
    %c0_40 = arith.constant 0 : index
    %73 = vector.load %arg4[%c0_37, %c1_38, %c0_39, %c0_40] : memref<1x2x8x1xf32, #tpu.memory_space<vmem>>, vector<1x1x8x1xf32>
    %74 = vector.shape_cast %73 : vector<1x1x8x1xf32> to vector<8x1xf32>
    %75 = vector.shape_cast %72 : vector<8x1xf32> to vector<1x1x8x1xf32>
    tpu.vector_store %arg4[%c0_37, %c1_38, %c0_39, %c0_40], %75 {strides = array<i32>} : memref<1x2x8x1xf32, #tpu.memory_space<vmem>>, vector<1x1x8x1xf32>,
    return
  }
  func.func @transform_0(%arg0: i32) -> (i32, i32, i32) {
    %c0_i32 = arith.constant 0 : i32
    %c0_i32_0 = arith.constant 0 : i32
    %c0_i32_1 = arith.constant 0 : i32
    return %arg0, %c0_i32, %c0_i32_0 : i32, i32, i32
  }
  func.func @transform_1(%arg0: i32) -> (i32, i32, i32) {
    %c0_i32 = arith.constant 0 : i32
    %c0_i32_0 = arith.constant 0 : i32
    %c0_i32_1 = arith.constant 0 : i32
    %c0_i32_2 = arith.constant 0 : i32
    return %c0_i32, %c0_i32_0, %c0_i32_1 : i32, i32, i32
  }
  func.func @transform_2(%arg0: i32) -> (i32, i32) {
    %c0_i32 = arith.constant 0 : i32
    %c0_i32_0 = arith.constant 0 : i32
    %c0_i32_1 = arith.constant 0 : i32
    return %c0_i32, %c0_i32_0 : i32, i32
  }
  func.func @transform_3(%arg0: i32) -> (i32, i32, i32, i32) {
    %c0_i32 = arith.constant 0 : i32
    %c0_i32_0 = arith.constant 0 : i32
    %c0_i32_1 = arith.constant 0 : i32
    %c0_i32_2 = arith.constant 0 : i32
    return %arg0, %c0_i32, %c0_i32_0, %c0_i32_1 : i32, i32, i32, i32
  }
}

</mosaic_0001>

<llo_original>
// kernel: conv_block_forward.3
$region0: #{conv_block_forward.3}
  #allocation0 [shape = 'u32[]', space=smem, size = 0x4, offset = 0x4, fixed_abs, tag = 'smem constant byte address 0x4 - core index']
  #allocation1 [shape = 'u32[144,128]{1,0:T(1,128)}', space=vmem, size = 0x12000, scoped, tag = 'internal scratch']
  %s0 = inlined_call_operand.vmem [shape: f32[2,4,290], index: 0, kind: input, shape index: {}]
  %s1 = inlined_call_operand.vmem [shape: f32[9,8,4], index: 1, kind: input, shape index: {}]
  %s2 = inlined_call_operand.vmem [shape: f32[3,256], index: 2, kind: input, shape index: {}]
  %s3 = inlined_call_operand.vmem [shape: f32[2,8,1], index: 3, kind: input, shape index: {}]
  %s4 = inlined_call_operand.vmem [shape: f32[2,8,256], index: 4, kind: output, shape index: {}]
  %s5 = sld [smem:[#allocation0]]
  $region49: #{conv_block_forward.3} parent=0
    _
  %s7 = ssub.s32 1, %s5
  %s8 = scalar_select 0, %s7, %s5
  loop: start=0, step=1, limit=4
  $region2: #{conv_block_forward.3} parent=0 // loop_pre_header
    _
  $region3: #{conv_block_forward.3} parent=0 // loop_header
    %s10 = sphi 0, %s14
    %p11 = scmp.ge.s32.totalorder %s10, 4
    %s20 = sphi 0, %s22
    %s23 = sphi 0, %s20
    %s24 = sphi 0, %s23
    %s40 = sphi 0, %s24
    %s44 = sphi 0, %s44
    %s46 = sphi 0, %s44
    %s47 = sphi 0, %s46
    %s61 = sphi 0, %s47
    %s65 = sphi 0, %s65
    %s67 = sphi 0, %s65
    %s68 = sphi 0, %s67
    %s82 = sphi 0, %s68
    %s86 = sphi 0, %s86
    %s88 = sphi 0, %s86
    %s89 = sphi 0, %s88
    %s103 = sphi 0, %s89
    %s109 = sphi 0, %s111
    %s112 = sphi 0, %s109
    %s113 = sphi 0, %s112
    %s129 = sphi 0, %s113
  $region4: #{conv_block_forward.3} parent=0 // loop_header_branch
    %13 = sbr.rel (%p11) target = $region8
  $region5: #{conv_block_forward.3} parent=0 // loop_body
    %s15 = ssub.s32 %s10, 1
    %s16 = ssub.s32 %s10, 2
    %s17 = sadd.s32 %s10, 1
    %s18 = ssub.s32 %s10, %s17
    %p19 = scmp.eq.s32.totalorder %s18, 0
    %s21 = sadd.s32 %s20, 1
    %s22 = scalar_select %p19, %s20, %s21
    %p25 = pneg %p19
    %p26 = scmp.eq.s32.totalorder %s10, 1
    %p27 = por %p25, %p26
    %p28 = scmp.ne.s32.totalorder %s20, %s23
    %p29 = scmp.eq.s32.totalorder %s10, 0
    %p30 = por %p28, %p29
    %p31 = scmp.ne.s32.totalorder %s20, %s23
    %p32 = scmp.eq.s32.totalorder %s15, 1
    %p33 = por %p31, %p32
    %p34 = scmp.ne.s32.totalorder %s23, %s24
    %p35 = scmp.eq.s32.totalorder %s15, 0
    %p36 = por %p34, %p35
    %p37 = scmp.ne.s32.totalorder %s23, %s24
    %p38 = scmp.eq.s32.totalorder %s16, 1
    %p39 = por %p37, %p38
    %p41 = scmp.ne.s32.totalorder %s24, %s40
    %p42 = scmp.eq.s32.totalorder %s16, 0
    %p43 = por %p41, %p42
    %s45 = sadd.s32 %s44, 1
    %p48 = scmp.eq.s32.totalorder %s10, 1
    %p49 = scmp.ne.s32.totalorder %s44, %s46
    %p50 = scmp.eq.s32.totalorder %s10, 0
    %p51 = por %p49, %p50
    %p52 = scmp.ne.s32.totalorder %s44, %s46
    %p53 = scmp.eq.s32.totalorder %s15, 1
    %p54 = por %p52, %p53
    %p55 = scmp.ne.s32.totalorder %s46, %s47
    %p56 = scmp.eq.s32.totalorder %s15, 0
    %p57 = por %p55, %p56
    %p58 = scmp.ne.s32.totalorder %s46, %s47
    %p59 = scmp.eq.s32.totalorder %s16, 1
    %p60 = por %p58, %p59
    %p62 = scmp.ne.s32.totalorder %s47, %s61
    %p63 = scmp.eq.s32.totalorder %s16, 0
    %p64 = por %p62, %p63
    %s66 = sadd.s32 %s65, 1
    %p69 = scmp.eq.s32.totalorder %s10, 1
    %p70 = scmp.ne.s32.totalorder %s65, %s67
    %p71 = scmp.eq.s32.totalorder %s10, 0
    %p72 = por %p70, %p71
    %p73 = scmp.ne.s32.totalorder %s65, %s67
    %p74 = scmp.eq.s32.totalorder %s15, 1
    %p75 = por %p73, %p74
    %p76 = scmp.ne.s32.totalorder %s67, %s68
    %p77 = scmp.eq.s32.totalorder %s15, 0
    %p78 = por %p76, %p77
    %p79 = scmp.ne.s32.totalorder %s67, %s68
    %p80 = scmp.eq.s32.totalorder %s16, 1
    %p81 = por %p79, %p80
    %p83 = scmp.ne.s32.totalorder %s68, %s82
    %p84 = scmp.eq.s32.totalorder %s16, 0
    %p85 = por %p83, %p84
    %s87 = sadd.s32 %s86, 1
    %p90 = scmp.eq.s32.totalorder %s10, 1
    %p91 = scmp.ne.s32.totalorder %s86, %s88
    %p92 = scmp.eq.s32.totalorder %s10, 0
    %p93 = por %p91, %p92
    %p94 = scmp.ne.s32.totalorder %s86, %s88
    %p95 = scmp.eq.s32.totalorder %s15, 1
    %p96 = por %p94, %p95
    %p97 = scmp.ne.s32.totalorder %s88, %s89
    %p98 = scmp.eq.s32.totalorder %s15, 0
    %p99 = por %p97, %p98
    %p100 = scmp.ne.s32.totalorder %s88, %s89
    %p101 = scmp.eq.s32.totalorder %s16, 1
    %p102 = por %p100, %p101
    %p104 = scmp.ne.s32.totalorder %s89, %s103
    %p105 = scmp.eq.s32.totalorder %s16, 0
    %p106 = por %p104, %p105
    %s107 = ssub.s32 %s10, %s17
    %p108 = scmp.eq.s32.totalorder %s107, 0
    %s110 = sadd.s32 %s109, 1
    %s111 = scalar_select %p108, %s109, %s110
    %p114 = pneg %p108
    %p115 = scmp.eq.s32.totalorder %s10, 1
    %p116 = por %p114, %p115
    %p117 = scmp.ne.s32.totalorder %s109, %s112
    %p118 = scmp.eq.s32.totalorder %s10, 0
    %p119 = por %p117, %p118
    %p120 = scmp.ne.s32.totalorder %s109, %s112
    %p121 = scmp.eq.s32.totalorder %s15, 1
    %p122 = por %p120, %p121
    %p123 = scmp.ne.s32.totalorder %s112, %s113
    %p124 = scmp.eq.s32.totalorder %s15, 0
    %p125 = por %p123, %p124
    %p126 = scmp.ne.s32.totalorder %s112, %s113
    %p127 = scmp.eq.s32.totalorder %s16, 1
    %p128 = por %p126, %p127
    %p130 = scmp.ne.s32.totalorder %s113, %s129
    %p131 = scmp.eq.s32.totalorder %s16, 0
    %p132 = por %p130, %p131
    %p133 = scmp.le.s32.totalorder 1, %s10
    %p134 = scmp.lt.s32.totalorder %s10, 3
    %p135 = pnand %p133, %p134
    %p136 = pneg %p135
    // Predicated region
    $region9: #{conv_block_forward.3} parent=5 // pred_check
      _
    $region10: #{conv_block_forward.3} parent=5 // pred_check_branch
      %138 = sbr.rel (%p135) target = $region12
    $region11: #{conv_block_forward.3} parent=5 // pred_region
      %s139 = ssub.s32 %s10, 1
      // Predicated region
      $region13: #{conv_block_forward.3} parent=11 // pred_check
        %p140 = pneg %p57
      $region14: #{conv_block_forward.3} parent=11 // pred_check_branch
        %142 = sbr.rel (%p140) target = $region16
      $region15: #{conv_block_forward.3} parent=11 // pred_region
        _
      $region16: #{conv_block_forward.3} parent=11 // pred_fallthru
        _
      // Predicated region
      $region17: #{conv_block_forward.3} parent=11 // pred_check
        %p143 = pneg %p78
      $region18: #{conv_block_forward.3} parent=11 // pred_check_branch
        %145 = sbr.rel (%p143) target = $region20
      $region19: #{conv_block_forward.3} parent=11 // pred_region
        _
      $region20: #{conv_block_forward.3} parent=11 // pred_fallthru
        _
      // Predicated region
      $region21: #{conv_block_forward.3} parent=11 // pred_check
        %p146 = pneg %p99
      $region22: #{conv_block_forward.3} parent=11 // pred_check_branch
        %148 = sbr.rel (%p146) target = $region24
      $region23: #{conv_block_forward.3} parent=11 // pred_region
        _
      $region24: #{conv_block_forward.3} parent=11 // pred_fallthru
        _
    $region12: #{conv_block_forward.3} parent=5 // pred_fallthru
      _
    %p149 = scmp.lt.s32.totalorder %s10, 2
    // Predicated region
    $region25: #{conv_block_forward.3} parent=5 // pred_check
      %p150 = pneg %p149
    $region26: #{conv_block_forward.3} parent=5 // pred_check_branch
      %152 = sbr.rel (%p150) target = $region28
    $region27: #{conv_block_forward.3} parent=5 // pred_region
      // Predicated region
      $region29: #{conv_block_forward.3} parent=27 // pred_check
        %p153 = pneg %p30
      $region30: #{conv_block_forward.3} parent=27 // pred_check_branch
        %155 = sbr.rel (%p153) target = $region32
      $region31: #{conv_block_forward.3} parent=27 // pred_region
        %p156 = scmp.lt.s32.totalorder %s10, 1
        %s157 = scalar_select %p156, %s10, 1
        %s158 = smul.addr %s157, 3
        %s159 = smul.addr %s158, 4
        %s160 = scalar_lea.vmem %s0, %s159
      $region32: #{conv_block_forward.3} parent=27 // pred_fallthru
        _
    $region28: #{conv_block_forward.3} parent=5 // pred_fallthru
      _
    %p161 = scmp.le.s32.totalorder 1, %s10
    %p162 = scmp.lt.s32.totalorder %s10, 3
    %p163 = pnand %p161, %p162
    %p164 = pneg %p163
    // Predicated region
    $region33: #{conv_block_forward.3} parent=5 // pred_check
      _
    $region34: #{conv_block_forward.3} parent=5 // pred_check_branch
      %166 = sbr.rel (%p163) target = $region36
    $region35: #{conv_block_forward.3} parent=5 // pred_region
      %s167 = ssub.s32 %s10, 1
      %p168 = scmp.lt.s32.totalorder %s15, 1
      %s169 = scalar_select %p168, %s15, 1
      %s170 = smul.addr %s169, 3
      %s171 = smul.addr %s170, 4
      %s172 = scalar_lea.vmem %s0, %s171
      %p173 = pneg %p36
      %p174 = pneg %p33
      %p175 = pneg %p57
      %p176 = pneg %p54
      %p177 = pneg %p78
      %p178 = pneg %p75
      %p179 = pneg %p99
      %p180 = pneg %p96
      %p181 = pneg %p125
      %p182 = pneg %p122
      %p183 = scmp.lt.s32.totalorder %s15, 1
      %s184 = scalar_select %p183, %s15, 1
      %s185 = smul.addr %s184, 2
      %s186 = smul.addr %s185, 8
      %s187 = scalar_lea.vmem %s4, %s186
      %p188 = scmp.lt.s32.totalorder %s15, 1
      %s189 = scalar_select %p188, %s15, 1
      %s190 = smul.addr %s189, 3
      %s191 = smul.addr %s190, 4
      %s192 = scalar_lea.vmem %s0, %s191
      %p193 = scmp.lt.s32.totalorder %s15, 1
      %s194 = scalar_select %p193, %s15, 1
      %s195 = smul.addr %s194, 2
      %s196 = smul.addr %s195, 8
      %s197 = scalar_lea.vmem %s4, %s196
      %v198 = vld [vmem:[%s192] sm:$0xff]
      %v199 = vld [vmem:[%s192 + $0x8] sm:$0xf]
      %v200 = vld [vmem:[%s2] sm:$0x77]
      %v202 = vlaneseq
      %v203 = vshrl.u32 %v202, 7
      %v204 = vsub.s32 0, %v203
      %v205 = vrot.slane %v200, %v204
      %v206 = vlaneseq
      %v207 = vshrl.u32 %v206, 7
      %v208 = vsub.s32 4, %v207
      %v209 = vrot.slane %v200, %v208
      %v212 = vlaneseq
      %v213 = vshrl.u32 %v212, 7
      %v214 = vsub.s32 0, %v213
      %v215 = vrot.slane %v205, %v214
      %v216 = vlaneseq
      %v217 = vshrl.u32 %v216, 7
      %v218 = vsub.s32 0, %v217
      %v219 = vrot.slane %v209, %v218
      %v222 = vcombine.low %v215, %v219
      %v224 = vmul.f32 %v198, %v222
      %v225 = vld [vmem:[%s1] sm:$0xff]
      %s226 = scalar_lea.vmem %s1, 8
      %v227 = vld [vmem:[%s226] sm:$0xff]
      %v230 = vcombine.high %v198, %v198
      %231 = vrot.lane.b32.xlu0 %v198, 127
      %v232 = vpop.permute.xlu0 %231
      %233 = vrot.lane.b32.xlu0 %v230, 127
      %v234 = vpop.permute.xlu0 %233
      %235 = vrot.lane.b32.xlu0 %v199, 127
      %v236 = vpop.permute.xlu0 %235
      %vm237 = vcmask 1039360
      %v238 = vsel %vm237, %v232, %v234
      %v239 = vsel %vm237, %v234, %v236
      %vm240 = vcmask 31744
      %v242 = vsel %vm240, %v227, 0
      %vm244 = vcmask 1043456
      %v245 = vsel %vm244, %v238, 0
      %v247 = vsel %vm244, %v239, 0
      %249 = vmatprep.subr.mxu0 0.0
      %250 = vmatpush1.msra.mxu0 0.0
      %251 = vmatprep.subr.mxu0 0.0
      %252 = vmatpush1.msra.mxu0 0.0
      %253 = vmatprep.subr.mxu0 0.0
      %254 = vmatpush1.msra.mxu0 0.0
      %255 = vmatprep.subr.mxu0 0.0
      %256 = vmatpush1.msra.mxu0 0.0
      %257 = vmatprep.subr.mxu0 0.0
      %258 = vmatpush1.msra.mxu0 0.0
      %259 = vmatprep.subr.mxu0 0.0
      %260 = vmatpush1.msra.mxu0 0.0
      %261 = vmatprep.subr.mxu0 0.0
      %262 = vmatpush1.msra.mxu0 0.0
      %263 = vmatprep.subr.mxu0 0.0
      %264 = vmatpush1.msra.mxu0 0.0
      %265 = vmatprep.subr.mxu0 0.0
      %266 = vmatpush1.msra.mxu0 0.0
      %267 = vmatprep.subr.mxu0 0.0
      %268 = vmatpush1.msra.mxu0 0.0
      %269 = vmatprep.subr.mxu0 0.0
      %270 = vmatpush1.msra.mxu0 0.0
      %271 = vmatprep.subr.mxu0 0.0
      %272 = vmatpush1.msra.mxu0 0.0
      %273 = vmatprep.subr.mxu0 0.0
      %274 = vmatpush1.msra.mxu0 0.0
      %275 = vmatprep.subr.mxu0 0.0
      %276 = vmatpush1.msra.mxu0 0.0
      %277 = vmatprep.subr.mxu0 0.0
      %278 = vmatpush1.msra.mxu0 0.0
      %279 = vmatprep.subr.mxu0 %v247
      %280 = vmatpush1.msra.mxu0 %v245
      %281 = vmatprep.subr.mxu0 0.0
      %282 = vmatpush2.msra.mxu0 0.0
      %283 = vmatprep.subr.mxu0 0.0
      %284 = vmatpush2.msra.mxu0 0.0
      %285 = vmatprep.subr.mxu0 0.0
      %286 = vmatpush2.msra.mxu0 0.0
      %287 = vmatprep.subr.mxu0 0.0
      %288 = vmatpush2.msra.mxu0 0.0
      %289 = vmatprep.subr.mxu0 0.0
      %290 = vmatpush2.msra.mxu0 0.0
      %291 = vmatprep.subr.mxu0 0.0
      %292 = vmatpush2.msra.mxu0 0.0
      %293 = vmatprep.subr.mxu0 0.0
      %294 = vmatpush2.msra.mxu0 0.0
      %295 = vmatprep.subr.mxu0 0.0
      %296 = vmatpush2.msra.mxu0 0.0
      %297 = vmatprep.subr.mxu0 0.0
      %298 = vmatpush2.msra.mxu0 0.0
      %299 = vmatprep.subr.mxu0 0.0
      %300 = vmatpush2.msra.mxu0 0.0
      %301 = vmatprep.subr.mxu0 0.0
      %302 = vmatpush2.msra.mxu0 0.0
      %303 = vmatprep.subr.mxu0 0.0
      %304 = vmatpush2.msra.mxu0 0.0
      %305 = vmatprep.subr.mxu0 0.0
      %306 = vmatpush2.msra.mxu0 0.0
      %307 = vmatprep.subr.mxu0 0.0
      %308 = vmatpush2.msra.mxu0 0.0
      %309 = vmatprep.subr.mxu0 0.0
      %310 = vmatpush2.msra.mxu0 0.0
      %311 = vmatprep.subr.mxu0 0.0
      %312 = vmatpush2.msra.mxu0 0.0
      %313 = vmatprep.mubr.f32.mxu0 0.0
      %314 = vmatmul.mubr.f32.gmra.mxu0 %v242
      %v315 = vpop.f32.mrf.mxu0
      %v316 = vadd.f32 0.0, %v315
      %v317 = vpop.f32.mrf.mxu0
      %v318 = vadd.f32 0.0, %v317
      %319 = vdwg.mxu0
      %v321 = vcombine.high %v224, %v224
      %v323 = vsel %vm240, %v225, 0
      %v325 = vsel %vm244, %v224, 0
      %v327 = vsel %vm244, %v321, 0
      %329 = vmatprep.subr.mxu0 0.0
      %330 = vmatpush1.msra.mxu0 0.0
      %331 = vmatprep.subr.mxu0 0.0
      %332 = vmatpush1.msra.mxu0 0.0
      %333 = vmatprep.subr.mxu0 0.0
      %334 = vmatpush1.msra.mxu0 0.0
      %335 = vmatprep.subr.mxu0 0.0
      %336 = vmatpush1.msra.mxu0 0.0
      %337 = vmatprep.subr.mxu0 0.0
      %338 = vmatpush1.msra.mxu0 0.0
      %339 = vmatprep.subr.mxu0 0.0
      %340 = vmatpush1.msra.mxu0 0.0
      %341 = vmatprep.subr.mxu0 0.0
      %342 = vmatpush1.msra.mxu0 0.0
      %343 = vmatprep.subr.mxu0 0.0
      %344 = vmatpush1.msra.mxu0 0.0
      %345 = vmatprep.subr.mxu0 0.0
      %346 = vmatpush1.msra.mxu0 0.0
      %347 = vmatprep.subr.mxu0 0.0
      %348 = vmatpush1.msra.mxu0 0.0
      %349 = vmatprep.subr.mxu0 0.0
      %350 = vmatpush1.msra.mxu0 0.0
      %351 = vmatprep.subr.mxu0 0.0
      %352 = vmatpush1.msra.mxu0 0.0
      %353 = vmatprep.subr.mxu0 0.0
      %354 = vmatpush1.msra.mxu0 0.0
      %355 = vmatprep.subr.mxu0 0.0
      %356 = vmatpush1.msra.mxu0 0.0
      %357 = vmatprep.subr.mxu0 0.0
      %358 = vmatpush1.msra.mxu0 0.0
      %359 = vmatprep.subr.mxu0 %v327
      %360 = vmatpush1.msra.mxu0 %v325
      %361 = vmatprep.subr.mxu0 0.0
      %362 = vmatpush2.msra.mxu0 0.0
      %363 = vmatprep.subr.mxu0 0.0
      %364 = vmatpush2.msra.mxu0 0.0
      %365 = vmatprep.subr.mxu0 0.0
      %366 = vmatpush2.msra.mxu0 0.0
      %367 = vmatprep.subr.mxu0 0.0
      %368 = vmatpush2.msra.mxu0 0.0
      %369 = vmatprep.subr.mxu0 0.0
      %370 = vmatpush2.msra.mxu0 0.0
      %371 = vmatprep.subr.mxu0 0.0
      %372 = vmatpush2.msra.mxu0 0.0
      %373 = vmatprep.subr.mxu0 0.0
      %374 = vmatpush2.msra.mxu0 0.0
      %375 = vmatprep.subr.mxu0 0.0
      %376 = vmatpush2.msra.mxu0 0.0
      %377 = vmatprep.subr.mxu0 0.0
      %378 = vmatpush2.msra.mxu0 0.0
      %379 = vmatprep.subr.mxu0 0.0
      %380 = vmatpush2.msra.mxu0 0.0
      %381 = vmatprep.subr.mxu0 0.0
      %382 = vmatpush2.msra.mxu0 0.0
      %383 = vmatprep.subr.mxu0 0.0
      %384 = vmatpush2.msra.mxu0 0.0
      %385 = vmatprep.subr.mxu0 0.0
      %386 = vmatpush2.msra.mxu0 0.0
      %387 = vmatprep.subr.mxu0 0.0
      %388 = vmatpush2.msra.mxu0 0.0
      %389 = vmatprep.subr.mxu0 0.0
      %390 = vmatpush2.msra.mxu0 0.0
      %391 = vmatprep.subr.mxu0 0.0
      %392 = vmatpush2.msra.mxu0 0.0
      %393 = vmatprep.mubr.f32.mxu0 0.0
      %394 = vmatmul.mubr.f32.gmra.mxu0 %v323
      %v395 = vpop.f32.mrf.mxu0
      %v396 = vadd.f32 %v316, %v395
      %v397 = vpop.f32.mrf.mxu0
      %v398 = vadd.f32 %v318, %v397
      %399 = vdwg.mxu0
      %v400 = vlaneseq
      %v401 = vshrl.u32 %v400, 7
      %v402 = vsub.s32 2, %v401
      %v403 = vrot.slane %v200, %v402
      %v404 = vlaneseq
      %v405 = vshrl.u32 %v404, 7
      %v406 = vsub.s32 6, %v405
      %v407 = vrot.slane %v200, %v406
      %v410 = vlaneseq
      %v411 = vshrl.u32 %v410, 7
      %v412 = vsub.s32 2, %v411
      %v413 = vrot.slane %v403, %v412
      %v414 = vlaneseq
      %v415 = vshrl.u32 %v414, 7
      %v416 = vsub.s32 2, %v415
      %v417 = vrot.slane %v407, %v416
      %v420 = vcombine.low %v413, %v417
      %421 = vrot.lane.b32.xlu0 %v420, 2
      %v422 = vpop.permute.xlu0 %421
      %v423 = vrot.slane %v422, 4
      %vm424 = vcmask 15360
      %v425 = vsel %vm424, %v423, %v422
      %v428 = vmul.f32 %v198, %v425
      %v429 = vmul.f32 %v199, %v423
      %s430 = scalar_lea.vmem %s1, 16
      %v431 = vld [vmem:[%s430] sm:$0xff]
      %v434 = vcombine.high %v428, %v428
      %435 = vrot.lane.b32.xlu0 %v428, 126
      %v436 = vpop.permute.xlu0 %435
      %437 = vrot.lane.b32.xlu0 %v434, 126
      %v438 = vpop.permute.xlu0 %437
      %439 = vrot.lane.b32.xlu0 %v429, 126
      %v440 = vpop.permute.xlu0 %439
      %vm441 = vcmask 1031168
      %v442 = vsel %vm441, %v436, %v438
      %v443 = vsel %vm441, %v438, %v440
      %v445 = vsel %vm240, %v431, 0
      %v447 = vsel %vm244, %v442, 0
      %v449 = vsel %vm244, %v443, 0
      %451 = vmatprep.subr.mxu0 0.0
      %452 = vmatpush1.msra.mxu0 0.0
      %453 = vmatprep.subr.mxu0 0.0
      %454 = vmatpush1.msra.mxu0 0.0
      %455 = vmatprep.subr.mxu0 0.0
      %456 = vmatpush1.msra.mxu0 0.0
      %457 = vmatprep.subr.mxu0 0.0
      %458 = vmatpush1.msra.mxu0 0.0
      %459 = vmatprep.subr.mxu0 0.0
      %460 = vmatpush1.msra.mxu0 0.0
      %461 = vmatprep.subr.mxu0 0.0
      %462 = vmatpush1.msra.mxu0 0.0
      %463 = vmatprep.subr.mxu0 0.0
      %464 = vmatpush1.msra.mxu0 0.0
      %465 = vmatprep.subr.mxu0 0.0
      %466 = vmatpush1.msra.mxu0 0.0
      %467 = vmatprep.subr.mxu0 0.0
      %468 = vmatpush1.msra.mxu0 0.0
      %469 = vmatprep.subr.mxu0 0.0
      %470 = vmatpush1.msra.mxu0 0.0
      %471 = vmatprep.subr.mxu0 0.0
      %472 = vmatpush1.msra.mxu0 0.0
      %473 = vmatprep.subr.mxu0 0.0
      %474 = vmatpush1.msra.mxu0 0.0
      %475 = vmatprep.subr.mxu0 0.0
      %476 = vmatpush1.msra.mxu0 0.0
      %477 = vmatprep.subr.mxu0 0.0
      %478 = vmatpush1.msra.mxu0 0.0
      %479 = vmatprep.subr.mxu0 0.0
      %480 = vmatpush1.msra.mxu0 0.0
      %481 = vmatprep.subr.mxu0 %v449
      %482 = vmatpush1.msra.mxu0 %v447
      %483 = vmatprep.subr.mxu0 0.0
      %484 = vmatpush2.msra.mxu0 0.0
      %485 = vmatprep.subr.mxu0 0.0
      %486 = vmatpush2.msra.mxu0 0.0
      %487 = vmatprep.subr.mxu0 0.0
      %488 = vmatpush2.msra.mxu0 0.0
      %489 = vmatprep.subr.mxu0 0.0
      %490 = vmatpush2.msra.mxu0 0.0
      %491 = vmatprep.subr.mxu0 0.0
      %492 = vmatpush2.msra.mxu0 0.0
      %493 = vmatprep.subr.mxu0 0.0
      %494 = vmatpush2.msra.mxu0 0.0
      %495 = vmatprep.subr.mxu0 0.0
      %496 = vmatpush2.msra.mxu0 0.0
      %497 = vmatprep.subr.mxu0 0.0
      %498 = vmatpush2.msra.mxu0 0.0
      %499 = vmatprep.subr.mxu0 0.0
      %500 = vmatpush2.msra.mxu0 0.0
      %501 = vmatprep.subr.mxu0 0.0
      %502 = vmatpush2.msra.mxu0 0.0
      %503 = vmatprep.subr.mxu0 0.0
      %504 = vmatpush2.msra.mxu0 0.0
      %505 = vmatprep.subr.mxu0 0.0
      %506 = vmatpush2.msra.mxu0 0.0
      %507 = vmatprep.subr.mxu0 0.0
      %508 = vmatpush2.msra.mxu0 0.0
      %509 = vmatprep.subr.mxu0 0.0
      %510 = vmatpush2.msra.mxu0 0.0
      %511 = vmatprep.subr.mxu0 0.0
      %512 = vmatpush2.msra.mxu0 0.0
      %513 = vmatprep.subr.mxu0 0.0
      %514 = vmatpush2.msra.mxu0 0.0
      %515 = vmatprep.mubr.f32.mxu0 0.0
      %516 = vmatmul.mubr.f32.gmra.mxu0 %v445
      %v517 = vpop.f32.mrf.mxu0
      %v518 = vadd.f32 0.0, %v517
      %v519 = vpop.f32.mrf.mxu0
      %v520 = vadd.f32 0.0, %v519
      %521 = vdwg.mxu0
      %v522 = vadd.f32 %v396, %v518
      %v523 = vadd.f32 %v398, %v520
      %524 = vrot.lane.b32.xlu0 %v222, 16
      %v525 = vpop.permute.xlu0 %524
      %v526 = vrot.slane %v525, 4
      %vm527 = vcmask 130048
      %v528 = vsel %vm527, %v526, %v525
      %v531 = vmul.f32 %v198, %v528
      %v532 = vmul.f32 %v199, %v526
      %s533 = scalar_lea.vmem %s1, 24
      %v534 = vld [vmem:[%s533] sm:$0xff]
      %v537 = vcombine.high %v531, %v531
      %538 = vrot.lane.b32.xlu0 %v531, 112
      %v539 = vpop.permute.xlu0 %538
      %540 = vrot.lane.b32.xlu0 %v537, 112
      %v541 = vpop.permute.xlu0 %540
      %542 = vrot.lane.b32.xlu0 %v532, 112
      %v543 = vpop.permute.xlu0 %542
      %vm544 = vcmask 916480
      %v545 = vsel %vm544, %v539, %v541
      %v546 = vsel %vm544, %v541, %v543
      %v548 = vsel %vm240, %v534, 0
      %v550 = vsel %vm244, %v545, 0
      %v552 = vsel %vm244, %v546, 0
      %554 = vmatprep.subr.mxu0 0.0
      %555 = vmatpush1.msra.mxu0 0.0
      %556 = vmatprep.subr.mxu0 0.0
      %557 = vmatpush1.msra.mxu0 0.0
      %558 = vmatprep.subr.mxu0 0.0
      %559 = vmatpush1.msra.mxu0 0.0
      %560 = vmatprep.subr.mxu0 0.0
      %561 = vmatpush1.msra.mxu0 0.0
      %562 = vmatprep.subr.mxu0 0.0
      %563 = vmatpush1.msra.mxu0 0.0
      %564 = vmatprep.subr.mxu0 0.0
      %565 = vmatpush1.msra.mxu0 0.0
      %566 = vmatprep.subr.mxu0 0.0
      %567 = vmatpush1.msra.mxu0 0.0
      %568 = vmatprep.subr.mxu0 0.0
      %569 = vmatpush1.msra.mxu0 0.0
      %570 = vmatprep.subr.mxu0 0.0
      %571 = vmatpush1.msra.mxu0 0.0
      %572 = vmatprep.subr.mxu0 0.0
      %573 = vmatpush1.msra.mxu0 0.0
      %574 = vmatprep.subr.mxu0 0.0
      %575 = vmatpush1.msra.mxu0 0.0
      %576 = vmatprep.subr.mxu0 0.0
      %577 = vmatpush1.msra.mxu0 0.0
      %578 = vmatprep.subr.mxu0 0.0
      %579 = vmatpush1.msra.mxu0 0.0
      %580 = vmatprep.subr.mxu0 0.0
      %581 = vmatpush1.msra.mxu0 0.0
      %582 = vmatprep.subr.mxu0 0.0
      %583 = vmatpush1.msra.mxu0 0.0
      %584 = vmatprep.subr.mxu0 %v552
      %585 = vmatpush1.msra.mxu0 %v550
      %586 = vmatprep.subr.mxu0 0.0
      %587 = vmatpush2.msra.mxu0 0.0
      %588 = vmatprep.subr.mxu0 0.0
      %589 = vmatpush2.msra.mxu0 0.0
      %590 = vmatprep.subr.mxu0 0.0
      %591 = vmatpush2.msra.mxu0 0.0
      %592 = vmatprep.subr.mxu0 0.0
      %593 = vmatpush2.msra.mxu0 0.0
      %594 = vmatprep.subr.mxu0 0.0
      %595 = vmatpush2.msra.mxu0 0.0
      %596 = vmatprep.subr.mxu0 0.0
      %597 = vmatpush2.msra.mxu0 0.0
      %598 = vmatprep.subr.mxu0 0.0
      %599 = vmatpush2.msra.mxu0 0.0
      %600 = vmatprep.subr.mxu0 0.0
      %601 = vmatpush2.msra.mxu0 0.0
      %602 = vmatprep.subr.mxu0 0.0
      %603 = vmatpush2.msra.mxu0 0.0
      %604 = vmatprep.subr.mxu0 0.0
      %605 = vmatpush2.msra.mxu0 0.0
      %606 = vmatprep.subr.mxu0 0.0
      %607 = vmatpush2.msra.mxu0 0.0
      %608 = vmatprep.subr.mxu0 0.0
      %609 = vmatpush2.msra.mxu0 0.0
      %610 = vmatprep.subr.mxu0 0.0
      %611 = vmatpush2.msra.mxu0 0.0
      %612 = vmatprep.subr.mxu0 0.0
      %613 = vmatpush2.msra.mxu0 0.0
      %614 = vmatprep.subr.mxu0 0.0
      %615 = vmatpush2.msra.mxu0 0.0
      %616 = vmatprep.subr.mxu0 0.0
      %617 = vmatpush2.msra.mxu0 0.0
      %618 = vmatprep.mubr.f32.mxu0 0.0
      %619 = vmatmul.mubr.f32.gmra.mxu0 %v548
      %v620 = vpop.f32.mrf.mxu0
      %v621 = vadd.f32 0.0, %v620
      %v622 = vpop.f32.mrf.mxu0
      %v623 = vadd.f32 0.0, %v622
      %624 = vdwg.mxu0
      %v625 = vadd.f32 %v522, %v621
      %v626 = vadd.f32 %v523, %v623
      %s627 = scalar_lea.vmem %s1, 32
      %v628 = vld [vmem:[%s627] sm:$0xff]
      %629 = vrot.lane.b32.xlu0 %v198, 111
      %v630 = vpop.permute.xlu0 %629
      %631 = vrot.lane.b32.xlu0 %v230, 111
      %v632 = vpop.permute.xlu0 %631
      %633 = vrot.lane.b32.xlu0 %v199, 111
      %v634 = vpop.permute.xlu0 %633
      %vm635 = vcmask 908288
      %v636 = vsel %vm635, %v630, %v632
      %v637 = vsel %vm635, %v632, %v634
      %v639 = vsel %vm240, %v628, 0
      %v641 = vsel %vm244, %v636, 0
      %v643 = vsel %vm244, %v637, 0
      %645 = vmatprep.subr.mxu0 0.0
      %646 = vmatpush1.msra.mxu0 0.0
      %647 = vmatprep.subr.mxu0 0.0
      %648 = vmatpush1.msra.mxu0 0.0
      %649 = vmatprep.subr.mxu0 0.0
      %650 = vmatpush1.msra.mxu0 0.0
      %651 = vmatprep.subr.mxu0 0.0
      %652 = vmatpush1.msra.mxu0 0.0
      %653 = vmatprep.subr.mxu0 0.0
      %654 = vmatpush1.msra.mxu0 0.0
      %655 = vmatprep.subr.mxu0 0.0
      %656 = vmatpush1.msra.mxu0 0.0
      %657 = vmatprep.subr.mxu0 0.0
      %658 = vmatpush1.msra.mxu0 0.0
      %659 = vmatprep.subr.mxu0 0.0
      %660 = vmatpush1.msra.mxu0 0.0
      %661 = vmatprep.subr.mxu0 0.0
      %662 = vmatpush1.msra.mxu0 0.0
      %663 = vmatprep.subr.mxu0 0.0
      %664 = vmatpush1.msra.mxu0 0.0
      %665 = vmatprep.subr.mxu0 0.0
      %666 = vmatpush1.msra.mxu0 0.0
      %667 = vmatprep.subr.mxu0 0.0
      %668 = vmatpush1.msra.mxu0 0.0
      %669 = vmatprep.subr.mxu0 0.0
      %670 = vmatpush1.msra.mxu0 0.0
      %671 = vmatprep.subr.mxu0 0.0
      %672 = vmatpush1.msra.mxu0 0.0
      %673 = vmatprep.subr.mxu0 0.0
      %674 = vmatpush1.msra.mxu0 0.0
      %675 = vmatprep.subr.mxu0 %v643
      %676 = vmatpush1.msra.mxu0 %v641
      %677 = vmatprep.subr.mxu0 0.0
      %678 = vmatpush2.msra.mxu0 0.0
      %679 = vmatprep.subr.mxu0 0.0
      %680 = vmatpush2.msra.mxu0 0.0
      %681 = vmatprep.subr.mxu0 0.0
      %682 = vmatpush2.msra.mxu0 0.0
      %683 = vmatprep.subr.mxu0 0.0
      %684 = vmatpush2.msra.mxu0 0.0
      %685 = vmatprep.subr.mxu0 0.0
      %686 = vmatpush2.msra.mxu0 0.0
      %687 = vmatprep.subr.mxu0 0.0
      %688 = vmatpush2.msra.mxu0 0.0
      %689 = vmatprep.subr.mxu0 0.0
      %690 = vmatpush2.msra.mxu0 0.0
      %691 = vmatprep.subr.mxu0 0.0
      %692 = vmatpush2.msra.mxu0 0.0
      %693 = vmatprep.subr.mxu0 0.0
      %694 = vmatpush2.msra.mxu0 0.0
      %695 = vmatprep.subr.mxu0 0.0
      %696 = vmatpush2.msra.mxu0 0.0
      %697 = vmatprep.subr.mxu0 0.0
      %698 = vmatpush2.msra.mxu0 0.0
      %699 = vmatprep.subr.mxu0 0.0
      %700 = vmatpush2.msra.mxu0 0.0
      %701 = vmatprep.subr.mxu0 0.0
      %702 = vmatpush2.msra.mxu0 0.0
      %703 = vmatprep.subr.mxu0 0.0
      %704 = vmatpush2.msra.mxu0 0.0
      %705 = vmatprep.subr.mxu0 0.0
      %706 = vmatpush2.msra.mxu0 0.0
      %707 = vmatprep.subr.mxu0 0.0
      %708 = vmatpush2.msra.mxu0 0.0
      %709 = vmatprep.mubr.f32.mxu0 0.0
      %710 = vmatmul.mubr.f32.gmra.mxu0 %v639
      %v711 = vpop.f32.mrf.mxu0
      %v712 = vadd.f32 0.0, %v711
      %v713 = vpop.f32.mrf.mxu0
      %v714 = vadd.f32 0.0, %v713
      %715 = vdwg.mxu0
      %v716 = vadd.f32 %v625, %v712
      %v717 = vadd.f32 %v626, %v714
      %718 = vrot.lane.b32.xlu0 %v420, 18
      %v719 = vpop.permute.xlu0 %718
      %v720 = vrot.slane %v719, 4
      %vm721 = vcmask 146432
      %v722 = vsel %vm721, %v720, %v719
      %v725 = vmul.f32 %v198, %v722
      %v726 = vmul.f32 %v199, %v720
      %s727 = scalar_lea.vmem %s1, 40
      %v728 = vld [vmem:[%s727] sm:$0xff]
      %v731 = vcombine.high %v725, %v725
      %732 = vrot.lane.b32.xlu0 %v725, 110
      %v733 = vpop.permute.xlu0 %732
      %734 = vrot.lane.b32.xlu0 %v731, 110
      %v735 = vpop.permute.xlu0 %734
      %736 = vrot.lane.b32.xlu0 %v726, 110
      %v737 = vpop.permute.xlu0 %736
      %vm738 = vcmask 900096
      %v739 = vsel %vm738, %v733, %v735
      %v740 = vsel %vm738, %v735, %v737
      %v742 = vsel %vm240, %v728, 0
      %v744 = vsel %vm244, %v739, 0
      %v746 = vsel %vm244, %v740, 0
      %748 = vmatprep.subr.mxu0 0.0
      %749 = vmatpush1.msra.mxu0 0.0
      %750 = vmatprep.subr.mxu0 0.0
      %751 = vmatpush1.msra.mxu0 0.0
      %752 = vmatprep.subr.mxu0 0.0
      %753 = vmatpush1.msra.mxu0 0.0
      %754 = vmatprep.subr.mxu0 0.0
      %755 = vmatpush1.msra.mxu0 0.0
      %756 = vmatprep.subr.mxu0 0.0
      %757 = vmatpush1.msra.mxu0 0.0
      %758 = vmatprep.subr.mxu0 0.0
      %759 = vmatpush1.msra.mxu0 0.0
      %760 = vmatprep.subr.mxu0 0.0
      %761 = vmatpush1.msra.mxu0 0.0
      %762 = vmatprep.subr.mxu0 0.0
      %763 = vmatpush1.msra.mxu0 0.0
      %764 = vmatprep.subr.mxu0 0.0
      %765 = vmatpush1.msra.mxu0 0.0
      %766 = vmatprep.subr.mxu0 0.0
      %767 = vmatpush1.msra.mxu0 0.0
      %768 = vmatprep.subr.mxu0 0.0
      %769 = vmatpush1.msra.mxu0 0.0
      %770 = vmatprep.subr.mxu0 0.0
      %771 = vmatpush1.msra.mxu0 0.0
      %772 = vmatprep.subr.mxu0 0.0
      %773 = vmatpush1.msra.mxu0 0.0
      %774 = vmatprep.subr.mxu0 0.0
      %775 = vmatpush1.msra.mxu0 0.0
      %776 = vmatprep.subr.mxu0 0.0
      %777 = vmatpush1.msra.mxu0 0.0
      %778 = vmatprep.subr.mxu0 %v746
      %779 = vmatpush1.msra.mxu0 %v744
      %780 = vmatprep.subr.mxu0 0.0
      %781 = vmatpush2.msra.mxu0 0.0
      %782 = vmatprep.subr.mxu0 0.0
      %783 = vmatpush2.msra.mxu0 0.0
      %784 = vmatprep.subr.mxu0 0.0
      %785 = vmatpush2.msra.mxu0 0.0
      %786 = vmatprep.subr.mxu0 0.0
      %787 = vmatpush2.msra.mxu0 0.0
      %788 = vmatprep.subr.mxu0 0.0
      %789 = vmatpush2.msra.mxu0 0.0
      %790 = vmatprep.subr.mxu0 0.0
      %791 = vmatpush2.msra.mxu0 0.0
      %792 = vmatprep.subr.mxu0 0.0
      %793 = vmatpush2.msra.mxu0 0.0
      %794 = vmatprep.subr.mxu0 0.0
      %795 = vmatpush2.msra.mxu0 0.0
      %796 = vmatprep.subr.mxu0 0.0
      %797 = vmatpush2.msra.mxu0 0.0
      %798 = vmatprep.subr.mxu0 0.0
      %799 = vmatpush2.msra.mxu0 0.0
      %800 = vmatprep.subr.mxu0 0.0
      %801 = vmatpush2.msra.mxu0 0.0
      %802 = vmatprep.subr.mxu0 0.0
      %803 = vmatpush2.msra.mxu0 0.0
      %804 = vmatprep.subr.mxu0 0.0
      %805 = vmatpush2.msra.mxu0 0.0
      %806 = vmatprep.subr.mxu0 0.0
      %807 = vmatpush2.msra.mxu0 0.0
      %808 = vmatprep.subr.mxu0 0.0
      %809 = vmatpush2.msra.mxu0 0.0
      %810 = vmatprep.subr.mxu0 0.0
      %811 = vmatpush2.msra.mxu0 0.0
      %812 = vmatprep.mubr.f32.mxu0 0.0
      %813 = vmatmul.mubr.f32.gmra.mxu0 %v742
      %v814 = vpop.f32.mrf.mxu0
      %v815 = vadd.f32 0.0, %v814
      %v816 = vpop.f32.mrf.mxu0
      %v817 = vadd.f32 0.0, %v816
      %818 = vdwg.mxu0
      %v819 = vadd.f32 %v716, %v815
      %v820 = vadd.f32 %v717, %v817
      %821 = vrot.lane.b32.xlu0 %v222, 32
      %v822 = vpop.permute.xlu0 %821
      %v823 = vrot.slane %v822, 4
      %vm824 = vcmask 261120
      %v825 = vsel %vm824, %v823, %v822
      %v828 = vmul.f32 %v198, %v825
      %v829 = vmul.f32 %v199, %v823
      %s830 = scalar_lea.vmem %s1, 48
      %v831 = vld [vmem:[%s830] sm:$0xff]
      %v834 = vcombine.high %v828, %v828
      %835 = vrot.lane.b32.xlu0 %v828, 96
      %v836 = vpop.permute.xlu0 %835
      %837 = vrot.lane.b32.xlu0 %v834, 96
      %v838 = vpop.permute.xlu0 %837
      %839 = vrot.lane.b32.xlu0 %v829, 96
      %v840 = vpop.permute.xlu0 %839
      %vm841 = vcmask 785408
      %v842 = vsel %vm841, %v836, %v838
      %v843 = vsel %vm841, %v838, %v840
      %v845 = vsel %vm240, %v831, 0
      %v847 = vsel %vm244, %v842, 0
      %v849 = vsel %vm244, %v843, 0
      %851 = vmatprep.subr.mxu0 0.0
      %852 = vmatpush1.msra.mxu0 0.0
      %853 = vmatprep.subr.mxu0 0.0
      %854 = vmatpush1.msra.mxu0 0.0
      %855 = vmatprep.subr.mxu0 0.0
      %856 = vmatpush1.msra.mxu0 0.0
      %857 = vmatprep.subr.mxu0 0.0
      %858 = vmatpush1.msra.mxu0 0.0
      %859 = vmatprep.subr.mxu0 0.0
      %860 = vmatpush1.msra.mxu0 0.0
      %861 = vmatprep.subr.mxu0 0.0
      %862 = vmatpush1.msra.mxu0 0.0
      %863 = vmatprep.subr.mxu0 0.0
      %864 = vmatpush1.msra.mxu0 0.0
      %865 = vmatprep.subr.mxu0 0.0
      %866 = vmatpush1.msra.mxu0 0.0
      %867 = vmatprep.subr.mxu0 0.0
      %868 = vmatpush1.msra.mxu0 0.0
      %869 = vmatprep.subr.mxu0 0.0
      %870 = vmatpush1.msra.mxu0 0.0
      %871 = vmatprep.subr.mxu0 0.0
      %872 = vmatpush1.msra.mxu0 0.0
      %873 = vmatprep.subr.mxu0 0.0
      %874 = vmatpush1.msra.mxu0 0.0
      %875 = vmatprep.subr.mxu0 0.0
      %876 = vmatpush1.msra.mxu0 0.0
      %877 = vmatprep.subr.mxu0 0.0
      %878 = vmatpush1.msra.mxu0 0.0
      %879 = vmatprep.subr.mxu0 0.0
      %880 = vmatpush1.msra.mxu0 0.0
      %881 = vmatprep.subr.mxu0 %v849
      %882 = vmatpush1.msra.mxu0 %v847
      %883 = vmatprep.subr.mxu0 0.0
      %884 = vmatpush2.msra.mxu0 0.0
      %885 = vmatprep.subr.mxu0 0.0
      %886 = vmatpush2.msra.mxu0 0.0
      %887 = vmatprep.subr.mxu0 0.0
      %888 = vmatpush2.msra.mxu0 0.0
      %889 = vmatprep.subr.mxu0 0.0
      %890 = vmatpush2.msra.mxu0 0.0
      %891 = vmatprep.subr.mxu0 0.0
      %892 = vmatpush2.msra.mxu0 0.0
      %893 = vmatprep.subr.mxu0 0.0
      %894 = vmatpush2.msra.mxu0 0.0
      %895 = vmatprep.subr.mxu0 0.0
      %896 = vmatpush2.msra.mxu0 0.0
      %897 = vmatprep.subr.mxu0 0.0
      %898 = vmatpush2.msra.mxu0 0.0
      %899 = vmatprep.subr.mxu0 0.0
      %900 = vmatpush2.msra.mxu0 0.0
      %901 = vmatprep.subr.mxu0 0.0
      %902 = vmatpush2.msra.mxu0 0.0
      %903 = vmatprep.subr.mxu0 0.0
      %904 = vmatpush2.msra.mxu0 0.0
      %905 = vmatprep.subr.mxu0 0.0
      %906 = vmatpush2.msra.mxu0 0.0
      %907 = vmatprep.subr.mxu0 0.0
      %908 = vmatpush2.msra.mxu0 0.0
      %909 = vmatprep.subr.mxu0 0.0
      %910 = vmatpush2.msra.mxu0 0.0
      %911 = vmatprep.subr.mxu0 0.0
      %912 = vmatpush2.msra.mxu0 0.0
      %913 = vmatprep.subr.mxu0 0.0
      %914 = vmatpush2.msra.mxu0 0.0
      %915 = vmatprep.mubr.f32.mxu0 0.0
      %916 = vmatmul.mubr.f32.gmra.mxu0 %v845
      %v917 = vpop.f32.mrf.mxu0
      %v918 = vadd.f32 0.0, %v917
      %v919 = vpop.f32.mrf.mxu0
      %v920 = vadd.f32 0.0, %v919
      %921 = vdwg.mxu0
      %v922 = vadd.f32 %v819, %v918
      %v923 = vadd.f32 %v820, %v920
      %s924 = scalar_lea.vmem %s1, 56
      %v925 = vld [vmem:[%s924] sm:$0xff]
      %926 = vrot.lane.b32.xlu0 %v198, 95
      %v927 = vpop.permute.xlu0 %926
      %928 = vrot.lane.b32.xlu0 %v230, 95
      %v929 = vpop.permute.xlu0 %928
      %930 = vrot.lane.b32.xlu0 %v199, 95
      %v931 = vpop.permute.xlu0 %930
      %vm932 = vcmask 777216
      %v933 = vsel %vm932, %v927, %v929
      %v934 = vsel %vm932, %v929, %v931
      %v936 = vsel %vm240, %v925, 0
      %v938 = vsel %vm244, %v933, 0
      %v940 = vsel %vm244, %v934, 0
      %942 = vmatprep.subr.mxu0 0.0
      %943 = vmatpush1.msra.mxu0 0.0
      %944 = vmatprep.subr.mxu0 0.0
      %945 = vmatpush1.msra.mxu0 0.0
      %946 = vmatprep.subr.mxu0 0.0
      %947 = vmatpush1.msra.mxu0 0.0
      %948 = vmatprep.subr.mxu0 0.0
      %949 = vmatpush1.msra.mxu0 0.0
      %950 = vmatprep.subr.mxu0 0.0
      %951 = vmatpush1.msra.mxu0 0.0
      %952 = vmatprep.subr.mxu0 0.0
      %953 = vmatpush1.msra.mxu0 0.0
      %954 = vmatprep.subr.mxu0 0.0
      %955 = vmatpush1.msra.mxu0 0.0
      %956 = vmatprep.subr.mxu0 0.0
      %957 = vmatpush1.msra.mxu0 0.0
      %958 = vmatprep.subr.mxu0 0.0
      %959 = vmatpush1.msra.mxu0 0.0
      %960 = vmatprep.subr.mxu0 0.0
      %961 = vmatpush1.msra.mxu0 0.0
      %962 = vmatprep.subr.mxu0 0.0
      %963 = vmatpush1.msra.mxu0 0.0
      %964 = vmatprep.subr.mxu0 0.0
      %965 = vmatpush1.msra.mxu0 0.0
      %966 = vmatprep.subr.mxu0 0.0
      %967 = vmatpush1.msra.mxu0 0.0
      %968 = vmatprep.subr.mxu0 0.0
      %969 = vmatpush1.msra.mxu0 0.0
      %970 = vmatprep.subr.mxu0 0.0
      %971 = vmatpush1.msra.mxu0 0.0
      %972 = vmatprep.subr.mxu0 %v940
      %973 = vmatpush1.msra.mxu0 %v938
      %974 = vmatprep.subr.mxu0 0.0
      %975 = vmatpush2.msra.mxu0 0.0
      %976 = vmatprep.subr.mxu0 0.0
      %977 = vmatpush2.msra.mxu0 0.0
      %978 = vmatprep.subr.mxu0 0.0
      %979 = vmatpush2.msra.mxu0 0.0
      %980 = vmatprep.subr.mxu0 0.0
      %981 = vmatpush2.msra.mxu0 0.0
      %982 = vmatprep.subr.mxu0 0.0
      %983 = vmatpush2.msra.mxu0 0.0
      %984 = vmatprep.subr.mxu0 0.0
      %985 = vmatpush2.msra.mxu0 0.0
      %986 = vmatprep.subr.mxu0 0.0
      %987 = vmatpush2.msra.mxu0 0.0
      %988 = vmatprep.subr.mxu0 0.0
      %989 = vmatpush2.msra.mxu0 0.0
      %990 = vmatprep.subr.mxu0 0.0
      %991 = vmatpush2.msra.mxu0 0.0
      %992 = vmatprep.subr.mxu0 0.0
      %993 = vmatpush2.msra.mxu0 0.0
      %994 = vmatprep.subr.mxu0 0.0
      %995 = vmatpush2.msra.mxu0 0.0
      %996 = vmatprep.subr.mxu0 0.0
      %997 = vmatpush2.msra.mxu0 0.0
      %998 = vmatprep.subr.mxu0 0.0
      %999 = vmatpush2.msra.mxu0 0.0
      %1000 = vmatprep.subr.mxu0 0.0
      %1001 = vmatpush2.msra.mxu0 0.0
      %1002 = vmatprep.subr.mxu0 0.0
      %1003 = vmatpush2.msra.mxu0 0.0
      %1004 = vmatprep.subr.mxu0 0.0
      %1005 = vmatpush2.msra.mxu0 0.0
      %1006 = vmatprep.mubr.f32.mxu0 0.0
      %1007 = vmatmul.mubr.f32.gmra.mxu0 %v936
      %v1008 = vpop.f32.mrf.mxu0
      %v1009 = vadd.f32 0.0, %v1008
      %v1010 = vpop.f32.mrf.mxu0
      %v1011 = vadd.f32 0.0, %v1010
      %1012 = vdwg.mxu0
      %v1013 = vadd.f32 %v922, %v1009
      %v1014 = vadd.f32 %v923, %v1011
      %1015 = vrot.lane.b32.xlu0 %v420, 34
      %v1016 = vpop.permute.xlu0 %1015
      %v1017 = vrot.slane %v1016, 4
      %vm1018 = vcmask 277504
      %v1019 = vsel %vm1018, %v1017, %v1016
      %v1022 = vmul.f32 %v198, %v1019
      %v1023 = vmul.f32 %v199, %v1017
      %s1024 = scalar_lea.vmem %s1, 64
      %v1025 = vld [vmem:[%s1024] sm:$0xff]
      %v1028 = vcombine.high %v1022, %v1022
      %1029 = vrot.lane.b32.xlu0 %v1022, 94
      %v1030 = vpop.permute.xlu0 %1029
      %1031 = vrot.lane.b32.xlu0 %v1028, 94
      %v1032 = vpop.permute.xlu0 %1031
      %1033 = vrot.lane.b32.xlu0 %v1023, 94
      %v1034 = vpop.permute.xlu0 %1033
      %vm1035 = vcmask 769024
      %v1036 = vsel %vm1035, %v1030, %v1032
      %v1037 = vsel %vm1035, %v1032, %v1034
      %v1039 = vsel %vm240, %v1025, 0
      %v1041 = vsel %vm244, %v1036, 0
      %v1043 = vsel %vm244, %v1037, 0
      %1045 = vmatprep.subr.mxu0 0.0
      %1046 = vmatpush1.msra.mxu0 0.0
      %1047 = vmatprep.subr.mxu0 0.0
      %1048 = vmatpush1.msra.mxu0 0.0
      %1049 = vmatprep.subr.mxu0 0.0
      %1050 = vmatpush1.msra.mxu0 0.0
      %1051 = vmatprep.subr.mxu0 0.0
      %1052 = vmatpush1.msra.mxu0 0.0
      %1053 = vmatprep.subr.mxu0 0.0
      %1054 = vmatpush1.msra.mxu0 0.0
      %1055 = vmatprep.subr.mxu0 0.0
      %1056 = vmatpush1.msra.mxu0 0.0
      %1057 = vmatprep.subr.mxu0 0.0
      %1058 = vmatpush1.msra.mxu0 0.0
      %1059 = vmatprep.subr.mxu0 0.0
      %1060 = vmatpush1.msra.mxu0 0.0
      %1061 = vmatprep.subr.mxu0 0.0
      %1062 = vmatpush1.msra.mxu0 0.0
      %1063 = vmatprep.subr.mxu0 0.0
      %1064 = vmatpush1.msra.mxu0 0.0
      %1065 = vmatprep.subr.mxu0 0.0
      %1066 = vmatpush1.msra.mxu0 0.0
      %1067 = vmatprep.subr.mxu0 0.0
      %1068 = vmatpush1.msra.mxu0 0.0
      %1069 = vmatprep.subr.mxu0 0.0
      %1070 = vmatpush1.msra.mxu0 0.0
      %1071 = vmatprep.subr.mxu0 0.0
      %1072 = vmatpush1.msra.mxu0 0.0
      %1073 = vmatprep.subr.mxu0 0.0
      %1074 = vmatpush1.msra.mxu0 0.0
      %1075 = vmatprep.subr.mxu0 %v1043
      %1076 = vmatpush1.msra.mxu0 %v1041
      %1077 = vmatprep.subr.mxu0 0.0
      %1078 = vmatpush2.msra.mxu0 0.0
      %1079 = vmatprep.subr.mxu0 0.0
      %1080 = vmatpush2.msra.mxu0 0.0
      %1081 = vmatprep.subr.mxu0 0.0
      %1082 = vmatpush2.msra.mxu0 0.0
      %1083 = vmatprep.subr.mxu0 0.0
      %1084 = vmatpush2.msra.mxu0 0.0
      %1085 = vmatprep.subr.mxu0 0.0
      %1086 = vmatpush2.msra.mxu0 0.0
      %1087 = vmatprep.subr.mxu0 0.0
      %1088 = vmatpush2.msra.mxu0 0.0
      %1089 = vmatprep.subr.mxu0 0.0
      %1090 = vmatpush2.msra.mxu0 0.0
      %1091 = vmatprep.subr.mxu0 0.0
      %1092 = vmatpush2.msra.mxu0 0.0
      %1093 = vmatprep.subr.mxu0 0.0
      %1094 = vmatpush2.msra.mxu0 0.0
      %1095 = vmatprep.subr.mxu0 0.0
      %1096 = vmatpush2.msra.mxu0 0.0
      %1097 = vmatprep.subr.mxu0 0.0
      %1098 = vmatpush2.msra.mxu0 0.0
      %1099 = vmatprep.subr.mxu0 0.0
      %1100 = vmatpush2.msra.mxu0 0.0
      %1101 = vmatprep.subr.mxu0 0.0
      %1102 = vmatpush2.msra.mxu0 0.0
      %1103 = vmatprep.subr.mxu0 0.0
      %1104 = vmatpush2.msra.mxu0 0.0
      %1105 = vmatprep.subr.mxu0 0.0
      %1106 = vmatpush2.msra.mxu0 0.0
      %1107 = vmatprep.subr.mxu0 0.0
      %1108 = vmatpush2.msra.mxu0 0.0
      %1109 = vmatprep.mubr.f32.mxu0 0.0
      %1110 = vmatmul.mubr.f32.gmra.mxu0 %v1039
      %v1111 = vpop.f32.mrf.mxu0
      %v1112 = vadd.f32 0.0, %v1111
      %v1113 = vpop.f32.mrf.mxu0
      %v1114 = vadd.f32 0.0, %v1113
      %1115 = vdwg.mxu0
      %v1116 = vadd.f32 %v1013, %v1112
      %v1117 = vadd.f32 %v1014, %v1114
      %v1118 = vld [vmem:[%s3] sm:$0xff]
      %1120 = vset.pattern.permute.xlu0 0
      %1121 = vperm.xlu0 %1120, %v1118
      %v1122 = vpop.permute.xlu0 %1121
      %v1124 = vmul.f32 %v1116, %v1122
      %v1125 = vmul.f32 %v1117, %v1122
      %s1126 = scalar_lea.vmem %s3, 8
      %v1127 = vld [vmem:[%s1126] sm:$0xff]
      %1129 = vset.pattern.permute.xlu0 0
      %1130 = vperm.xlu0 %1129, %v1127
      %v1131 = vpop.permute.xlu0 %1130
      %v1133 = vadd.f32 %v1124, %v1131
      %v1134 = vadd.f32 %v1125, %v1131
      %v1135 = vmax.f32 %v1133, 0.0
      %v1136 = vmax.f32 %v1134, 0.0
      %1137 = vst [vmem:[%s197] sm:$0xff] %v1135
      %1138 = vst [vmem:[%s197 + $0x8] sm:$0xff] %v1136
      %p1139 = scmp.lt.s32.totalorder %s15, 1
      %s1140 = scalar_select %p1139, %s15, 1
      %s1141 = smul.addr %s1140, 2
      %s1142 = smul.addr %s1141, 8
      %s1143 = scalar_lea.vmem %s4, %s1142
      // Predicated region
      $region37: #{conv_block_forward.3} parent=35 // pred_check
        %p1144 = pneg %p122
      $region38: #{conv_block_forward.3} parent=35 // pred_check_branch
        %1146 = sbr.rel (%p1144) target = $region40
      $region39: #{conv_block_forward.3} parent=35 // pred_region
        _
      $region40: #{conv_block_forward.3} parent=35 // pred_fallthru
        _
    $region36: #{conv_block_forward.3} parent=5 // pred_fallthru
      _
    %p1147 = scmp.le.s32.totalorder 2, %s10
    // Predicated region
    $region41: #{conv_block_forward.3} parent=5 // pred_check
      %p1148 = pneg %p1147
    $region42: #{conv_block_forward.3} parent=5 // pred_check_branch
      %1150 = sbr.rel (%p1148) target = $region44
    $region43: #{conv_block_forward.3} parent=5 // pred_region
      %s1151 = ssub.s32 %s10, 2
      // Predicated region
      $region45: #{conv_block_forward.3} parent=43 // pred_check
        %p1152 = pneg %p128
      $region46: #{conv_block_forward.3} parent=43 // pred_check_branch
        %1154 = sbr.rel (%p1152) target = $region48
      $region47: #{conv_block_forward.3} parent=43 // pred_region
        %p1155 = scmp.lt.s32.totalorder %s16, 1
        %s1156 = scalar_select %p1155, %s16, 1
        %s1157 = smul.addr %s1156, 2
        %s1158 = smul.addr %s1157, 8
        %s1159 = scalar_lea.vmem %s4, %s1158
      $region48: #{conv_block_forward.3} parent=43 // pred_fallthru
        _
    $region44: #{conv_block_forward.3} parent=5 // pred_fallthru
      _
  $region6: #{conv_block_forward.3} parent=0 // loop_footer
    %s14 = sadd.s32 1, %s10
  $region7: #{conv_block_forward.3} parent=0 // loop_footer_branch
    %9 = sbr.rel target = $region3
  $region8: #{conv_block_forward.3} parent=0 // loop_exit
    _

// kernel: conv_block_forward.2
$region0: #{conv_block_forward.2}
  #allocation0 [shape = 'u32[]', space=smem, size = 0x4, offset = 0x4, fixed_abs, tag = 'smem constant byte address 0x4 - core index']
  #allocation1 [shape = 'u32[144,128]{1,0:T(1,128)}', space=vmem, size = 0x12000, scoped, tag = 'internal scratch']
  %s0 = inlined_call_operand.vmem [shape: f32[2,4,290], index: 0, kind: input, shape index: {}]
  %s1 = inlined_call_operand.vmem [shape: f32[9,8,4], index: 1, kind: input, shape index: {}]
  %s2 = inlined_call_operand.vmem [shape: f32[3,256], index: 2, kind: input, shape index: {}]
  %s3 = inlined_call_operand.vmem [shape: f32[2,2,8,1], index: 3, kind: output, shape index: {}]
  %s4 = sld [smem:[#allocation0]]
  $region45: #{conv_block_forward.2} parent=0
    _
  %s6 = ssub.s32 1, %s4
  %s7 = scalar_select 0, %s6, %s4
  loop: start=0, step=1, limit=4
  $region2: #{conv_block_forward.2} parent=0 // loop_pre_header
    _
  $region3: #{conv_block_forward.2} parent=0 // loop_header
    %s9 = sphi 0, %s13
    %p10 = scmp.ge.s32.totalorder %s9, 4
    %s19 = sphi 0, %s21
    %s22 = sphi 0, %s19
    %s23 = sphi 0, %s22
    %s39 = sphi 0, %s23
    %s43 = sphi 0, %s43
    %s45 = sphi 0, %s43
    %s46 = sphi 0, %s45
    %s60 = sphi 0, %s46
    %s64 = sphi 0, %s64
    %s66 = sphi 0, %s64
    %s67 = sphi 0, %s66
    %s81 = sphi 0, %s67
    %s87 = sphi 0, %s89
    %s90 = sphi 0, %s87
    %s91 = sphi 0, %s90
    %s107 = sphi 0, %s91
  $region4: #{conv_block_forward.2} parent=0 // loop_header_branch
    %12 = sbr.rel (%p10) target = $region8
  $region5: #{conv_block_forward.2} parent=0 // loop_body
    %s14 = ssub.s32 %s9, 1
    %s15 = ssub.s32 %s9, 2
    %s16 = sadd.s32 %s9, 1
    %s17 = ssub.s32 %s9, %s16
    %p18 = scmp.eq.s32.totalorder %s17, 0
    %s20 = sadd.s32 %s19, 1
    %s21 = scalar_select %p18, %s19, %s20
    %p24 = pneg %p18
    %p25 = scmp.eq.s32.totalorder %s9, 1
    %p26 = por %p24, %p25
    %p27 = scmp.ne.s32.totalorder %s19, %s22
    %p28 = scmp.eq.s32.totalorder %s9, 0
    %p29 = por %p27, %p28
    %p30 = scmp.ne.s32.totalorder %s19, %s22
    %p31 = scmp.eq.s32.totalorder %s14, 1
    %p32 = por %p30, %p31
    %p33 = scmp.ne.s32.totalorder %s22, %s23
    %p34 = scmp.eq.s32.totalorder %s14, 0
    %p35 = por %p33, %p34
    %p36 = scmp.ne.s32.totalorder %s22, %s23
    %p37 = scmp.eq.s32.totalorder %s15, 1
    %p38 = por %p36, %p37
    %p40 = scmp.ne.s32.totalorder %s23, %s39
    %p41 = scmp.eq.s32.totalorder %s15, 0
    %p42 = por %p40, %p41
    %s44 = sadd.s32 %s43, 1
    %p47 = scmp.eq.s32.totalorder %s9, 1
    %p48 = scmp.ne.s32.totalorder %s43, %s45
    %p49 = scmp.eq.s32.totalorder %s9, 0
    %p50 = por %p48, %p49
    %p51 = scmp.ne.s32.totalorder %s43, %s45
    %p52 = scmp.eq.s32.totalorder %s14, 1
    %p53 = por %p51, %p52
    %p54 = scmp.ne.s32.totalorder %s45, %s46
    %p55 = scmp.eq.s32.totalorder %s14, 0
    %p56 = por %p54, %p55
    %p57 = scmp.ne.s32.totalorder %s45, %s46
    %p58 = scmp.eq.s32.totalorder %s15, 1
    %p59 = por %p57, %p58
    %p61 = scmp.ne.s32.totalorder %s46, %s60
    %p62 = scmp.eq.s32.totalorder %s15, 0
    %p63 = por %p61, %p62
    %s65 = sadd.s32 %s64, 1
    %p68 = scmp.eq.s32.totalorder %s9, 1
    %p69 = scmp.ne.s32.totalorder %s64, %s66
    %p70 = scmp.eq.s32.totalorder %s9, 0
    %p71 = por %p69, %p70
    %p72 = scmp.ne.s32.totalorder %s64, %s66
    %p73 = scmp.eq.s32.totalorder %s14, 1
    %p74 = por %p72, %p73
    %p75 = scmp.ne.s32.totalorder %s66, %s67
    %p76 = scmp.eq.s32.totalorder %s14, 0
    %p77 = por %p75, %p76
    %p78 = scmp.ne.s32.totalorder %s66, %s67
    %p79 = scmp.eq.s32.totalorder %s15, 1
    %p80 = por %p78, %p79
    %p82 = scmp.ne.s32.totalorder %s67, %s81
    %p83 = scmp.eq.s32.totalorder %s15, 0
    %p84 = por %p82, %p83
    %s85 = ssub.s32 %s9, %s16
    %p86 = scmp.eq.s32.totalorder %s85, 0
    %s88 = sadd.s32 %s87, 1
    %s89 = scalar_select %p86, %s87, %s88
    %p92 = pneg %p86
    %p93 = scmp.eq.s32.totalorder %s9, 1
    %p94 = por %p92, %p93
    %p95 = scmp.ne.s32.totalorder %s87, %s90
    %p96 = scmp.eq.s32.totalorder %s9, 0
    %p97 = por %p95, %p96
    %p98 = scmp.ne.s32.totalorder %s87, %s90
    %p99 = scmp.eq.s32.totalorder %s14, 1
    %p100 = por %p98, %p99
    %p101 = scmp.ne.s32.totalorder %s90, %s91
    %p102 = scmp.eq.s32.totalorder %s14, 0
    %p103 = por %p101, %p102
    %p104 = scmp.ne.s32.totalorder %s90, %s91
    %p105 = scmp.eq.s32.totalorder %s15, 1
    %p106 = por %p104, %p105
    %p108 = scmp.ne.s32.totalorder %s91, %s107
    %p109 = scmp.eq.s32.totalorder %s15, 0
    %p110 = por %p108, %p109
    %p111 = scmp.le.s32.totalorder 1, %s9
    %p112 = scmp.lt.s32.totalorder %s9, 3
    %p113 = pnand %p111, %p112
    %p114 = pneg %p113
    // Predicated region
    $region9: #{conv_block_forward.2} parent=5 // pred_check
      _
    $region10: #{conv_block_forward.2} parent=5 // pred_check_branch
      %116 = sbr.rel (%p113) target = $region12
    $region11: #{conv_block_forward.2} parent=5 // pred_region
      %s117 = ssub.s32 %s9, 1
      // Predicated region
      $region13: #{conv_block_forward.2} parent=11 // pred_check
        %p118 = pneg %p56
      $region14: #{conv_block_forward.2} parent=11 // pred_check_branch
        %120 = sbr.rel (%p118) target = $region16
      $region15: #{conv_block_forward.2} parent=11 // pred_region
        _
      $region16: #{conv_block_forward.2} parent=11 // pred_fallthru
        _
      // Predicated region
      $region17: #{conv_block_forward.2} parent=11 // pred_check
        %p121 = pneg %p77
      $region18: #{conv_block_forward.2} parent=11 // pred_check_branch
        %123 = sbr.rel (%p121) target = $region20
      $region19: #{conv_block_forward.2} parent=11 // pred_region
        _
      $region20: #{conv_block_forward.2} parent=11 // pred_fallthru
        _
    $region12: #{conv_block_forward.2} parent=5 // pred_fallthru
      _
    %p124 = scmp.lt.s32.totalorder %s9, 2
    // Predicated region
    $region21: #{conv_block_forward.2} parent=5 // pred_check
      %p125 = pneg %p124
    $region22: #{conv_block_forward.2} parent=5 // pred_check_branch
      %127 = sbr.rel (%p125) target = $region24
    $region23: #{conv_block_forward.2} parent=5 // pred_region
      // Predicated region
      $region25: #{conv_block_forward.2} parent=23 // pred_check
        %p128 = pneg %p29
      $region26: #{conv_block_forward.2} parent=23 // pred_check_branch
        %130 = sbr.rel (%p128) target = $region28
      $region27: #{conv_block_forward.2} parent=23 // pred_region
        %p131 = scmp.lt.s32.totalorder %s9, 1
        %s132 = scalar_select %p131, %s9, 1
        %s133 = smul.addr %s132, 3
        %s134 = smul.addr %s133, 4
        %s135 = scalar_lea.vmem %s0, %s134
      $region28: #{conv_block_forward.2} parent=23 // pred_fallthru
        _
    $region24: #{conv_block_forward.2} parent=5 // pred_fallthru
      _
    %p136 = scmp.le.s32.totalorder 1, %s9
    %p137 = scmp.lt.s32.totalorder %s9, 3
    %p138 = pnand %p136, %p137
    %p139 = pneg %p138
    // Predicated region
    $region29: #{conv_block_forward.2} parent=5 // pred_check
      _
    $region30: #{conv_block_forward.2} parent=5 // pred_check_branch
      %141 = sbr.rel (%p138) target = $region32
    $region31: #{conv_block_forward.2} parent=5 // pred_region
      %s142 = ssub.s32 %s9, 1
      %p143 = scmp.lt.s32.totalorder %s14, 1
      %s144 = scalar_select %p143, %s14, 1
      %s145 = smul.addr %s144, 3
      %s146 = smul.addr %s145, 4
      %s147 = scalar_lea.vmem %s0, %s146
      %p148 = pneg %p35
      %p149 = pneg %p32
      %p150 = pneg %p56
      %p151 = pneg %p53
      %p152 = pneg %p77
      %p153 = pneg %p74
      %p154 = pneg %p103
      %p155 = pneg %p100
      %p156 = scmp.lt.s32.totalorder %s14, 1
      %s157 = scalar_select %p156, %s14, 1
      %s158 = smul.addr %s157, 2
      %s159 = smul.addr %s158, 8
      %s160 = scalar_lea.vmem %s3, %s159
      %p161 = scmp.lt.s32.totalorder %s14, 1
      %s162 = scalar_select %p161, %s14, 1
      %s163 = smul.addr %s162, 3
      %s164 = smul.addr %s163, 4
      %s165 = scalar_lea.vmem %s0, %s164
      %p166 = scmp.lt.s32.totalorder %s14, 1
      %s167 = scalar_select %p166, %s14, 1
      %s168 = smul.addr %s167, 2
      %s169 = smul.addr %s168, 8
      %s170 = scalar_lea.vmem %s3, %s169
      %v171 = vld [vmem:[%s165] sm:$0xff]
      %v172 = vld [vmem:[%s165 + $0x8] sm:$0xf]
      %v173 = vld [vmem:[%s2] sm:$0x77]
      %v175 = vlaneseq
      %v176 = vshrl.u32 %v175, 7
      %v177 = vsub.s32 0, %v176
      %v178 = vrot.slane %v173, %v177
      %v179 = vlaneseq
      %v180 = vshrl.u32 %v179, 7
      %v181 = vsub.s32 4, %v180
      %v182 = vrot.slane %v173, %v181
      %v185 = vlaneseq
      %v186 = vshrl.u32 %v185, 7
      %v187 = vsub.s32 0, %v186
      %v188 = vrot.slane %v178, %v187
      %v189 = vlaneseq
      %v190 = vshrl.u32 %v189, 7
      %v191 = vsub.s32 0, %v190
      %v192 = vrot.slane %v182, %v191
      %v195 = vcombine.low %v188, %v192
      %v197 = vmul.f32 %v171, %v195
      %v198 = vld [vmem:[%s1] sm:$0xff]
      %s199 = scalar_lea.vmem %s1, 8
      %v200 = vld [vmem:[%s199] sm:$0xff]
      %v203 = vcombine.high %v171, %v171
      %204 = vrot.lane.b32.xlu0 %v171, 127
      %v205 = vpop.permute.xlu0 %204
      %206 = vrot.lane.b32.xlu0 %v203, 127
      %v207 = vpop.permute.xlu0 %206
      %208 = vrot.lane.b32.xlu0 %v172, 127
      %v209 = vpop.permute.xlu0 %208
      %vm210 = vcmask 1039360
      %v211 = vsel %vm210, %v205, %v207
      %v212 = vsel %vm210, %v207, %v209
      %vm213 = vcmask 31744
      %v215 = vsel %vm213, %v200, 0
      %vm217 = vcmask 1043456
      %v218 = vsel %vm217, %v211, 0
      %v220 = vsel %vm217, %v212, 0
      %222 = vmatprep.subr.mxu0 0.0
      %223 = vmatpush1.msra.mxu0 0.0
      %224 = vmatprep.subr.mxu0 0.0
      %225 = vmatpush1.msra.mxu0 0.0
      %226 = vmatprep.subr.mxu0 0.0
      %227 = vmatpush1.msra.mxu0 0.0
      %228 = vmatprep.subr.mxu0 0.0
      %229 = vmatpush1.msra.mxu0 0.0
      %230 = vmatprep.subr.mxu0 0.0
      %231 = vmatpush1.msra.mxu0 0.0
      %232 = vmatprep.subr.mxu0 0.0
      %233 = vmatpush1.msra.mxu0 0.0
      %234 = vmatprep.subr.mxu0 0.0
      %235 = vmatpush1.msra.mxu0 0.0
      %236 = vmatprep.subr.mxu0 0.0
      %237 = vmatpush1.msra.mxu0 0.0
      %238 = vmatprep.subr.mxu0 0.0
      %239 = vmatpush1.msra.mxu0 0.0
      %240 = vmatprep.subr.mxu0 0.0
      %241 = vmatpush1.msra.mxu0 0.0
      %242 = vmatprep.subr.mxu0 0.0
      %243 = vmatpush1.msra.mxu0 0.0
      %244 = vmatprep.subr.mxu0 0.0
      %245 = vmatpush1.msra.mxu0 0.0
      %246 = vmatprep.subr.mxu0 0.0
      %247 = vmatpush1.msra.mxu0 0.0
      %248 = vmatprep.subr.mxu0 0.0
      %249 = vmatpush1.msra.mxu0 0.0
      %250 = vmatprep.subr.mxu0 0.0
      %251 = vmatpush1.msra.mxu0 0.0
      %252 = vmatprep.subr.mxu0 %v220
      %253 = vmatpush1.msra.mxu0 %v218
      %254 = vmatprep.subr.mxu0 0.0
      %255 = vmatpush2.msra.mxu0 0.0
      %256 = vmatprep.subr.mxu0 0.0
      %257 = vmatpush2.msra.mxu0 0.0
      %258 = vmatprep.subr.mxu0 0.0
      %259 = vmatpush2.msra.mxu0 0.0
      %260 = vmatprep.subr.mxu0 0.0
      %261 = vmatpush2.msra.mxu0 0.0
      %262 = vmatprep.subr.mxu0 0.0
      %263 = vmatpush2.msra.mxu0 0.0
      %264 = vmatprep.subr.mxu0 0.0
      %265 = vmatpush2.msra.mxu0 0.0
      %266 = vmatprep.subr.mxu0 0.0
      %267 = vmatpush2.msra.mxu0 0.0
      %268 = vmatprep.subr.mxu0 0.0
      %269 = vmatpush2.msra.mxu0 0.0
      %270 = vmatprep.subr.mxu0 0.0
      %271 = vmatpush2.msra.mxu0 0.0
      %272 = vmatprep.subr.mxu0 0.0
      %273 = vmatpush2.msra.mxu0 0.0
      %274 = vmatprep.subr.mxu0 0.0
      %275 = vmatpush2.msra.mxu0 0.0
      %276 = vmatprep.subr.mxu0 0.0
      %277 = vmatpush2.msra.mxu0 0.0
      %278 = vmatprep.subr.mxu0 0.0
      %279 = vmatpush2.msra.mxu0 0.0
      %280 = vmatprep.subr.mxu0 0.0
      %281 = vmatpush2.msra.mxu0 0.0
      %282 = vmatprep.subr.mxu0 0.0
      %283 = vmatpush2.msra.mxu0 0.0
      %284 = vmatprep.subr.mxu0 0.0
      %285 = vmatpush2.msra.mxu0 0.0
      %286 = vmatprep.mubr.f32.mxu0 0.0
      %287 = vmatmul.mubr.f32.gmra.mxu0 %v215
      %v288 = vpop.f32.mrf.mxu0
      %v289 = vadd.f32 0.0, %v288
      %v290 = vpop.f32.mrf.mxu0
      %v291 = vadd.f32 0.0, %v290
      %292 = vdwg.mxu0
      %v294 = vcombine.high %v197, %v197
      %v296 = vsel %vm213, %v198, 0
      %v298 = vsel %vm217, %v197, 0
      %v300 = vsel %vm217, %v294, 0
      %302 = vmatprep.subr.mxu0 0.0
      %303 = vmatpush1.msra.mxu0 0.0
      %304 = vmatprep.subr.mxu0 0.0
      %305 = vmatpush1.msra.mxu0 0.0
      %306 = vmatprep.subr.mxu0 0.0
      %307 = vmatpush1.msra.mxu0 0.0
      %308 = vmatprep.subr.mxu0 0.0
      %309 = vmatpush1.msra.mxu0 0.0
      %310 = vmatprep.subr.mxu0 0.0
      %311 = vmatpush1.msra.mxu0 0.0
      %312 = vmatprep.subr.mxu0 0.0
      %313 = vmatpush1.msra.mxu0 0.0
      %314 = vmatprep.subr.mxu0 0.0
      %315 = vmatpush1.msra.mxu0 0.0
      %316 = vmatprep.subr.mxu0 0.0
      %317 = vmatpush1.msra.mxu0 0.0
      %318 = vmatprep.subr.mxu0 0.0
      %319 = vmatpush1.msra.mxu0 0.0
      %320 = vmatprep.subr.mxu0 0.0
      %321 = vmatpush1.msra.mxu0 0.0
      %322 = vmatprep.subr.mxu0 0.0
      %323 = vmatpush1.msra.mxu0 0.0
      %324 = vmatprep.subr.mxu0 0.0
      %325 = vmatpush1.msra.mxu0 0.0
      %326 = vmatprep.subr.mxu0 0.0
      %327 = vmatpush1.msra.mxu0 0.0
      %328 = vmatprep.subr.mxu0 0.0
      %329 = vmatpush1.msra.mxu0 0.0
      %330 = vmatprep.subr.mxu0 0.0
      %331 = vmatpush1.msra.mxu0 0.0
      %332 = vmatprep.subr.mxu0 %v300
      %333 = vmatpush1.msra.mxu0 %v298
      %334 = vmatprep.subr.mxu0 0.0
      %335 = vmatpush2.msra.mxu0 0.0
      %336 = vmatprep.subr.mxu0 0.0
      %337 = vmatpush2.msra.mxu0 0.0
      %338 = vmatprep.subr.mxu0 0.0
      %339 = vmatpush2.msra.mxu0 0.0
      %340 = vmatprep.subr.mxu0 0.0
      %341 = vmatpush2.msra.mxu0 0.0
      %342 = vmatprep.subr.mxu0 0.0
      %343 = vmatpush2.msra.mxu0 0.0
      %344 = vmatprep.subr.mxu0 0.0
      %345 = vmatpush2.msra.mxu0 0.0
      %346 = vmatprep.subr.mxu0 0.0
      %347 = vmatpush2.msra.mxu0 0.0
      %348 = vmatprep.subr.mxu0 0.0
      %349 = vmatpush2.msra.mxu0 0.0
      %350 = vmatprep.subr.mxu0 0.0
      %351 = vmatpush2.msra.mxu0 0.0
      %352 = vmatprep.subr.mxu0 0.0
      %353 = vmatpush2.msra.mxu0 0.0
      %354 = vmatprep.subr.mxu0 0.0
      %355 = vmatpush2.msra.mxu0 0.0
      %356 = vmatprep.subr.mxu0 0.0
      %357 = vmatpush2.msra.mxu0 0.0
      %358 = vmatprep.subr.mxu0 0.0
      %359 = vmatpush2.msra.mxu0 0.0
      %360 = vmatprep.subr.mxu0 0.0
      %361 = vmatpush2.msra.mxu0 0.0
      %362 = vmatprep.subr.mxu0 0.0
      %363 = vmatpush2.msra.mxu0 0.0
      %364 = vmatprep.subr.mxu0 0.0
      %365 = vmatpush2.msra.mxu0 0.0
      %366 = vmatprep.mubr.f32.mxu0 0.0
      %367 = vmatmul.mubr.f32.gmra.mxu0 %v296
      %v368 = vpop.f32.mrf.mxu0
      %v369 = vadd.f32 %v289, %v368
      %v370 = vpop.f32.mrf.mxu0
      %v371 = vadd.f32 %v291, %v370
      %372 = vdwg.mxu0
      %v373 = vlaneseq
      %v374 = vshrl.u32 %v373, 7
      %v375 = vsub.s32 2, %v374
      %v376 = vrot.slane %v173, %v375
      %v377 = vlaneseq
      %v378 = vshrl.u32 %v377, 7
      %v379 = vsub.s32 6, %v378
      %v380 = vrot.slane %v173, %v379
      %v383 = vlaneseq
      %v384 = vshrl.u32 %v383, 7
      %v385 = vsub.s32 2, %v384
      %v386 = vrot.slane %v376, %v385
      %v387 = vlaneseq
      %v388 = vshrl.u32 %v387, 7
      %v389 = vsub.s32 2, %v388
      %v390 = vrot.slane %v380, %v389
      %v393 = vcombine.low %v386, %v390
      %394 = vrot.lane.b32.xlu0 %v393, 2
      %v395 = vpop.permute.xlu0 %394
      %v396 = vrot.slane %v395, 4
      %vm397 = vcmask 15360
      %v398 = vsel %vm397, %v396, %v395
      %v401 = vmul.f32 %v171, %v398
      %v402 = vmul.f32 %v172, %v396
      %s403 = scalar_lea.vmem %s1, 16
      %v404 = vld [vmem:[%s403] sm:$0xff]
      %v407 = vcombine.high %v401, %v401
      %408 = vrot.lane.b32.xlu0 %v401, 126
      %v409 = vpop.permute.xlu0 %408
      %410 = vrot.lane.b32.xlu0 %v407, 126
      %v411 = vpop.permute.xlu0 %410
      %412 = vrot.lane.b32.xlu0 %v402, 126
      %v413 = vpop.permute.xlu0 %412
      %vm414 = vcmask 1031168
      %v415 = vsel %vm414, %v409, %v411
      %v416 = vsel %vm414, %v411, %v413
      %v418 = vsel %vm213, %v404, 0
      %v420 = vsel %vm217, %v415, 0
      %v422 = vsel %vm217, %v416, 0
      %424 = vmatprep.subr.mxu0 0.0
      %425 = vmatpush1.msra.mxu0 0.0
      %426 = vmatprep.subr.mxu0 0.0
      %427 = vmatpush1.msra.mxu0 0.0
      %428 = vmatprep.subr.mxu0 0.0
      %429 = vmatpush1.msra.mxu0 0.0
      %430 = vmatprep.subr.mxu0 0.0
      %431 = vmatpush1.msra.mxu0 0.0
      %432 = vmatprep.subr.mxu0 0.0
      %433 = vmatpush1.msra.mxu0 0.0
      %434 = vmatprep.subr.mxu0 0.0
      %435 = vmatpush1.msra.mxu0 0.0
      %436 = vmatprep.subr.mxu0 0.0
      %437 = vmatpush1.msra.mxu0 0.0
      %438 = vmatprep.subr.mxu0 0.0
      %439 = vmatpush1.msra.mxu0 0.0
      %440 = vmatprep.subr.mxu0 0.0
      %441 = vmatpush1.msra.mxu0 0.0
      %442 = vmatprep.subr.mxu0 0.0
      %443 = vmatpush1.msra.mxu0 0.0
      %444 = vmatprep.subr.mxu0 0.0
      %445 = vmatpush1.msra.mxu0 0.0
      %446 = vmatprep.subr.mxu0 0.0
      %447 = vmatpush1.msra.mxu0 0.0
      %448 = vmatprep.subr.mxu0 0.0
      %449 = vmatpush1.msra.mxu0 0.0
      %450 = vmatprep.subr.mxu0 0.0
      %451 = vmatpush1.msra.mxu0 0.0
      %452 = vmatprep.subr.mxu0 0.0
      %453 = vmatpush1.msra.mxu0 0.0
      %454 = vmatprep.subr.mxu0 %v422
      %455 = vmatpush1.msra.mxu0 %v420
      %456 = vmatprep.subr.mxu0 0.0
      %457 = vmatpush2.msra.mxu0 0.0
      %458 = vmatprep.subr.mxu0 0.0
      %459 = vmatpush2.msra.mxu0 0.0
      %460 = vmatprep.subr.mxu0 0.0
      %461 = vmatpush2.msra.mxu0 0.0
      %462 = vmatprep.subr.mxu0 0.0
      %463 = vmatpush2.msra.mxu0 0.0
      %464 = vmatprep.subr.mxu0 0.0
      %465 = vmatpush2.msra.mxu0 0.0
      %466 = vmatprep.subr.mxu0 0.0
      %467 = vmatpush2.msra.mxu0 0.0
      %468 = vmatprep.subr.mxu0 0.0
      %469 = vmatpush2.msra.mxu0 0.0
      %470 = vmatprep.subr.mxu0 0.0
      %471 = vmatpush2.msra.mxu0 0.0
      %472 = vmatprep.subr.mxu0 0.0
      %473 = vmatpush2.msra.mxu0 0.0
      %474 = vmatprep.subr.mxu0 0.0
      %475 = vmatpush2.msra.mxu0 0.0
      %476 = vmatprep.subr.mxu0 0.0
      %477 = vmatpush2.msra.mxu0 0.0
      %478 = vmatprep.subr.mxu0 0.0
      %479 = vmatpush2.msra.mxu0 0.0
      %480 = vmatprep.subr.mxu0 0.0
      %481 = vmatpush2.msra.mxu0 0.0
      %482 = vmatprep.subr.mxu0 0.0
      %483 = vmatpush2.msra.mxu0 0.0
      %484 = vmatprep.subr.mxu0 0.0
      %485 = vmatpush2.msra.mxu0 0.0
      %486 = vmatprep.subr.mxu0 0.0
      %487 = vmatpush2.msra.mxu0 0.0
      %488 = vmatprep.mubr.f32.mxu0 0.0
      %489 = vmatmul.mubr.f32.gmra.mxu0 %v418
      %v490 = vpop.f32.mrf.mxu0
      %v491 = vadd.f32 0.0, %v490
      %v492 = vpop.f32.mrf.mxu0
      %v493 = vadd.f32 0.0, %v492
      %494 = vdwg.mxu0
      %v495 = vadd.f32 %v369, %v491
      %v496 = vadd.f32 %v371, %v493
      %497 = vrot.lane.b32.xlu0 %v195, 16
      %v498 = vpop.permute.xlu0 %497
      %v499 = vrot.slane %v498, 4
      %vm500 = vcmask 130048
      %v501 = vsel %vm500, %v499, %v498
      %v504 = vmul.f32 %v171, %v501
      %v505 = vmul.f32 %v172, %v499
      %s506 = scalar_lea.vmem %s1, 24
      %v507 = vld [vmem:[%s506] sm:$0xff]
      %v510 = vcombine.high %v504, %v504
      %511 = vrot.lane.b32.xlu0 %v504, 112
      %v512 = vpop.permute.xlu0 %511
      %513 = vrot.lane.b32.xlu0 %v510, 112
      %v514 = vpop.permute.xlu0 %513
      %515 = vrot.lane.b32.xlu0 %v505, 112
      %v516 = vpop.permute.xlu0 %515
      %vm517 = vcmask 916480
      %v518 = vsel %vm517, %v512, %v514
      %v519 = vsel %vm517, %v514, %v516
      %v521 = vsel %vm213, %v507, 0
      %v523 = vsel %vm217, %v518, 0
      %v525 = vsel %vm217, %v519, 0
      %527 = vmatprep.subr.mxu0 0.0
      %528 = vmatpush1.msra.mxu0 0.0
      %529 = vmatprep.subr.mxu0 0.0
      %530 = vmatpush1.msra.mxu0 0.0
      %531 = vmatprep.subr.mxu0 0.0
      %532 = vmatpush1.msra.mxu0 0.0
      %533 = vmatprep.subr.mxu0 0.0
      %534 = vmatpush1.msra.mxu0 0.0
      %535 = vmatprep.subr.mxu0 0.0
      %536 = vmatpush1.msra.mxu0 0.0
      %537 = vmatprep.subr.mxu0 0.0
      %538 = vmatpush1.msra.mxu0 0.0
      %539 = vmatprep.subr.mxu0 0.0
      %540 = vmatpush1.msra.mxu0 0.0
      %541 = vmatprep.subr.mxu0 0.0
      %542 = vmatpush1.msra.mxu0 0.0
      %543 = vmatprep.subr.mxu0 0.0
      %544 = vmatpush1.msra.mxu0 0.0
      %545 = vmatprep.subr.mxu0 0.0
      %546 = vmatpush1.msra.mxu0 0.0
      %547 = vmatprep.subr.mxu0 0.0
      %548 = vmatpush1.msra.mxu0 0.0
      %549 = vmatprep.subr.mxu0 0.0
      %550 = vmatpush1.msra.mxu0 0.0
      %551 = vmatprep.subr.mxu0 0.0
      %552 = vmatpush1.msra.mxu0 0.0
      %553 = vmatprep.subr.mxu0 0.0
      %554 = vmatpush1.msra.mxu0 0.0
      %555 = vmatprep.subr.mxu0 0.0
      %556 = vmatpush1.msra.mxu0 0.0
      %557 = vmatprep.subr.mxu0 %v525
      %558 = vmatpush1.msra.mxu0 %v523
      %559 = vmatprep.subr.mxu0 0.0
      %560 = vmatpush2.msra.mxu0 0.0
      %561 = vmatprep.subr.mxu0 0.0
      %562 = vmatpush2.msra.mxu0 0.0
      %563 = vmatprep.subr.mxu0 0.0
      %564 = vmatpush2.msra.mxu0 0.0
      %565 = vmatprep.subr.mxu0 0.0
      %566 = vmatpush2.msra.mxu0 0.0
      %567 = vmatprep.subr.mxu0 0.0
      %568 = vmatpush2.msra.mxu0 0.0
      %569 = vmatprep.subr.mxu0 0.0
      %570 = vmatpush2.msra.mxu0 0.0
      %571 = vmatprep.subr.mxu0 0.0
      %572 = vmatpush2.msra.mxu0 0.0
      %573 = vmatprep.subr.mxu0 0.0
      %574 = vmatpush2.msra.mxu0 0.0
      %575 = vmatprep.subr.mxu0 0.0
      %576 = vmatpush2.msra.mxu0 0.0
      %577 = vmatprep.subr.mxu0 0.0
      %578 = vmatpush2.msra.mxu0 0.0
      %579 = vmatprep.subr.mxu0 0.0
      %580 = vmatpush2.msra.mxu0 0.0
      %581 = vmatprep.subr.mxu0 0.0
      %582 = vmatpush2.msra.mxu0 0.0
      %583 = vmatprep.subr.mxu0 0.0
      %584 = vmatpush2.msra.mxu0 0.0
      %585 = vmatprep.subr.mxu0 0.0
      %586 = vmatpush2.msra.mxu0 0.0
      %587 = vmatprep.subr.mxu0 0.0
      %588 = vmatpush2.msra.mxu0 0.0
      %589 = vmatprep.subr.mxu0 0.0
      %590 = vmatpush2.msra.mxu0 0.0
      %591 = vmatprep.mubr.f32.mxu0 0.0
      %592 = vmatmul.mubr.f32.gmra.mxu0 %v521
      %v593 = vpop.f32.mrf.mxu0
      %v594 = vadd.f32 0.0, %v593
      %v595 = vpop.f32.mrf.mxu0
      %v596 = vadd.f32 0.0, %v595
      %597 = vdwg.mxu0
      %v598 = vadd.f32 %v495, %v594
      %v599 = vadd.f32 %v496, %v596
      %s600 = scalar_lea.vmem %s1, 32
      %v601 = vld [vmem:[%s600] sm:$0xff]
      %602 = vrot.lane.b32.xlu0 %v171, 111
      %v603 = vpop.permute.xlu0 %602
      %604 = vrot.lane.b32.xlu0 %v203, 111
      %v605 = vpop.permute.xlu0 %604
      %606 = vrot.lane.b32.xlu0 %v172, 111
      %v607 = vpop.permute.xlu0 %606
      %vm608 = vcmask 908288
      %v609 = vsel %vm608, %v603, %v605
      %v610 = vsel %vm608, %v605, %v607
      %v612 = vsel %vm213, %v601, 0
      %v614 = vsel %vm217, %v609, 0
      %v616 = vsel %vm217, %v610, 0
      %618 = vmatprep.subr.mxu0 0.0
      %619 = vmatpush1.msra.mxu0 0.0
      %620 = vmatprep.subr.mxu0 0.0
      %621 = vmatpush1.msra.mxu0 0.0
      %622 = vmatprep.subr.mxu0 0.0
      %623 = vmatpush1.msra.mxu0 0.0
      %624 = vmatprep.subr.mxu0 0.0
      %625 = vmatpush1.msra.mxu0 0.0
      %626 = vmatprep.subr.mxu0 0.0
      %627 = vmatpush1.msra.mxu0 0.0
      %628 = vmatprep.subr.mxu0 0.0
      %629 = vmatpush1.msra.mxu0 0.0
      %630 = vmatprep.subr.mxu0 0.0
      %631 = vmatpush1.msra.mxu0 0.0
      %632 = vmatprep.subr.mxu0 0.0
      %633 = vmatpush1.msra.mxu0 0.0
      %634 = vmatprep.subr.mxu0 0.0
      %635 = vmatpush1.msra.mxu0 0.0
      %636 = vmatprep.subr.mxu0 0.0
      %637 = vmatpush1.msra.mxu0 0.0
      %638 = vmatprep.subr.mxu0 0.0
      %639 = vmatpush1.msra.mxu0 0.0
      %640 = vmatprep.subr.mxu0 0.0
      %641 = vmatpush1.msra.mxu0 0.0
      %642 = vmatprep.subr.mxu0 0.0
      %643 = vmatpush1.msra.mxu0 0.0
      %644 = vmatprep.subr.mxu0 0.0
      %645 = vmatpush1.msra.mxu0 0.0
      %646 = vmatprep.subr.mxu0 0.0
      %647 = vmatpush1.msra.mxu0 0.0
      %648 = vmatprep.subr.mxu0 %v616
      %649 = vmatpush1.msra.mxu0 %v614
      %650 = vmatprep.subr.mxu0 0.0
      %651 = vmatpush2.msra.mxu0 0.0
      %652 = vmatprep.subr.mxu0 0.0
      %653 = vmatpush2.msra.mxu0 0.0
      %654 = vmatprep.subr.mxu0 0.0
      %655 = vmatpush2.msra.mxu0 0.0
      %656 = vmatprep.subr.mxu0 0.0
      %657 = vmatpush2.msra.mxu0 0.0
      %658 = vmatprep.subr.mxu0 0.0
      %659 = vmatpush2.msra.mxu0 0.0
      %660 = vmatprep.subr.mxu0 0.0
      %661 = vmatpush2.msra.mxu0 0.0
      %662 = vmatprep.subr.mxu0 0.0
      %663 = vmatpush2.msra.mxu0 0.0
      %664 = vmatprep.subr.mxu0 0.0
      %665 = vmatpush2.msra.mxu0 0.0
      %666 = vmatprep.subr.mxu0 0.0
      %667 = vmatpush2.msra.mxu0 0.0
      %668 = vmatprep.subr.mxu0 0.0
      %669 = vmatpush2.msra.mxu0 0.0
      %670 = vmatprep.subr.mxu0 0.0
      %671 = vmatpush2.msra.mxu0 0.0
      %672 = vmatprep.subr.mxu0 0.0
      %673 = vmatpush2.msra.mxu0 0.0
      %674 = vmatprep.subr.mxu0 0.0
      %675 = vmatpush2.msra.mxu0 0.0
      %676 = vmatprep.subr.mxu0 0.0
      %677 = vmatpush2.msra.mxu0 0.0
      %678 = vmatprep.subr.mxu0 0.0
      %679 = vmatpush2.msra.mxu0 0.0
      %680 = vmatprep.subr.mxu0 0.0
      %681 = vmatpush2.msra.mxu0 0.0
      %682 = vmatprep.mubr.f32.mxu0 0.0
      %683 = vmatmul.mubr.f32.gmra.mxu0 %v612
      %v684 = vpop.f32.mrf.mxu0
      %v685 = vadd.f32 0.0, %v684
      %v686 = vpop.f32.mrf.mxu0
      %v687 = vadd.f32 0.0, %v686
      %688 = vdwg.mxu0
      %v689 = vadd.f32 %v598, %v685
      %v690 = vadd.f32 %v599, %v687
      %691 = vrot.lane.b32.xlu0 %v393, 18
      %v692 = vpop.permute.xlu0 %691
      %v693 = vrot.slane %v692, 4
      %vm694 = vcmask 146432
      %v695 = vsel %vm694, %v693, %v692
      %v698 = vmul.f32 %v171, %v695
      %v699 = vmul.f32 %v172, %v693
      %s700 = scalar_lea.vmem %s1, 40
      %v701 = vld [vmem:[%s700] sm:$0xff]
      %v704 = vcombine.high %v698, %v698
      %705 = vrot.lane.b32.xlu0 %v698, 110
      %v706 = vpop.permute.xlu0 %705
      %707 = vrot.lane.b32.xlu0 %v704, 110
      %v708 = vpop.permute.xlu0 %707
      %709 = vrot.lane.b32.xlu0 %v699, 110
      %v710 = vpop.permute.xlu0 %709
      %vm711 = vcmask 900096
      %v712 = vsel %vm711, %v706, %v708
      %v713 = vsel %vm711, %v708, %v710
      %v715 = vsel %vm213, %v701, 0
      %v717 = vsel %vm217, %v712, 0
      %v719 = vsel %vm217, %v713, 0
      %721 = vmatprep.subr.mxu0 0.0
      %722 = vmatpush1.msra.mxu0 0.0
      %723 = vmatprep.subr.mxu0 0.0
      %724 = vmatpush1.msra.mxu0 0.0
      %725 = vmatprep.subr.mxu0 0.0
      %726 = vmatpush1.msra.mxu0 0.0
      %727 = vmatprep.subr.mxu0 0.0
      %728 = vmatpush1.msra.mxu0 0.0
      %729 = vmatprep.subr.mxu0 0.0
      %730 = vmatpush1.msra.mxu0 0.0
      %731 = vmatprep.subr.mxu0 0.0
      %732 = vmatpush1.msra.mxu0 0.0
      %733 = vmatprep.subr.mxu0 0.0
      %734 = vmatpush1.msra.mxu0 0.0
      %735 = vmatprep.subr.mxu0 0.0
      %736 = vmatpush1.msra.mxu0 0.0
      %737 = vmatprep.subr.mxu0 0.0
      %738 = vmatpush1.msra.mxu0 0.0
      %739 = vmatprep.subr.mxu0 0.0
      %740 = vmatpush1.msra.mxu0 0.0
      %741 = vmatprep.subr.mxu0 0.0
      %742 = vmatpush1.msra.mxu0 0.0
      %743 = vmatprep.subr.mxu0 0.0
      %744 = vmatpush1.msra.mxu0 0.0
      %745 = vmatprep.subr.mxu0 0.0
      %746 = vmatpush1.msra.mxu0 0.0
      %747 = vmatprep.subr.mxu0 0.0
      %748 = vmatpush1.msra.mxu0 0.0
      %749 = vmatprep.subr.mxu0 0.0
      %750 = vmatpush1.msra.mxu0 0.0
      %751 = vmatprep.subr.mxu0 %v719
      %752 = vmatpush1.msra.mxu0 %v717
      %753 = vmatprep.subr.mxu0 0.0
      %754 = vmatpush2.msra.mxu0 0.0
      %755 = vmatprep.subr.mxu0 0.0
      %756 = vmatpush2.msra.mxu0 0.0
      %757 = vmatprep.subr.mxu0 0.0
      %758 = vmatpush2.msra.mxu0 0.0
      %759 = vmatprep.subr.mxu0 0.0
      %760 = vmatpush2.msra.mxu0 0.0
      %761 = vmatprep.subr.mxu0 0.0
      %762 = vmatpush2.msra.mxu0 0.0
      %763 = vmatprep.subr.mxu0 0.0
      %764 = vmatpush2.msra.mxu0 0.0
      %765 = vmatprep.subr.mxu0 0.0
      %766 = vmatpush2.msra.mxu0 0.0
      %767 = vmatprep.subr.mxu0 0.0
      %768 = vmatpush2.msra.mxu0 0.0
      %769 = vmatprep.subr.mxu0 0.0
      %770 = vmatpush2.msra.mxu0 0.0
      %771 = vmatprep.subr.mxu0 0.0
      %772 = vmatpush2.msra.mxu0 0.0
      %773 = vmatprep.subr.mxu0 0.0
      %774 = vmatpush2.msra.mxu0 0.0
      %775 = vmatprep.subr.mxu0 0.0
      %776 = vmatpush2.msra.mxu0 0.0
      %777 = vmatprep.subr.mxu0 0.0
      %778 = vmatpush2.msra.mxu0 0.0
      %779 = vmatprep.subr.mxu0 0.0
      %780 = vmatpush2.msra.mxu0 0.0
      %781 = vmatprep.subr.mxu0 0.0
      %782 = vmatpush2.msra.mxu0 0.0
      %783 = vmatprep.subr.mxu0 0.0
      %784 = vmatpush2.msra.mxu0 0.0
      %785 = vmatprep.mubr.f32.mxu0 0.0
      %786 = vmatmul.mubr.f32.gmra.mxu0 %v715
      %v787 = vpop.f32.mrf.mxu0
      %v788 = vadd.f32 0.0, %v787
      %v789 = vpop.f32.mrf.mxu0
      %v790 = vadd.f32 0.0, %v789
      %791 = vdwg.mxu0
      %v792 = vadd.f32 %v689, %v788
      %v793 = vadd.f32 %v690, %v790
      %794 = vrot.lane.b32.xlu0 %v195, 32
      %v795 = vpop.permute.xlu0 %794
      %v796 = vrot.slane %v795, 4
      %vm797 = vcmask 261120
      %v798 = vsel %vm797, %v796, %v795
      %v801 = vmul.f32 %v171, %v798
      %v802 = vmul.f32 %v172, %v796
      %s803 = scalar_lea.vmem %s1, 48
      %v804 = vld [vmem:[%s803] sm:$0xff]
      %v807 = vcombine.high %v801, %v801
      %808 = vrot.lane.b32.xlu0 %v801, 96
      %v809 = vpop.permute.xlu0 %808
      %810 = vrot.lane.b32.xlu0 %v807, 96
      %v811 = vpop.permute.xlu0 %810
      %812 = vrot.lane.b32.xlu0 %v802, 96
      %v813 = vpop.permute.xlu0 %812
      %vm814 = vcmask 785408
      %v815 = vsel %vm814, %v809, %v811
      %v816 = vsel %vm814, %v811, %v813
      %v818 = vsel %vm213, %v804, 0
      %v820 = vsel %vm217, %v815, 0
      %v822 = vsel %vm217, %v816, 0
      %824 = vmatprep.subr.mxu0 0.0
      %825 = vmatpush1.msra.mxu0 0.0
      %826 = vmatprep.subr.mxu0 0.0
      %827 = vmatpush1.msra.mxu0 0.0
      %828 = vmatprep.subr.mxu0 0.0
      %829 = vmatpush1.msra.mxu0 0.0
      %830 = vmatprep.subr.mxu0 0.0
      %831 = vmatpush1.msra.mxu0 0.0
      %832 = vmatprep.subr.mxu0 0.0
      %833 = vmatpush1.msra.mxu0 0.0
      %834 = vmatprep.subr.mxu0 0.0
      %835 = vmatpush1.msra.mxu0 0.0
      %836 = vmatprep.subr.mxu0 0.0
      %837 = vmatpush1.msra.mxu0 0.0
      %838 = vmatprep.subr.mxu0 0.0
      %839 = vmatpush1.msra.mxu0 0.0
      %840 = vmatprep.subr.mxu0 0.0
      %841 = vmatpush1.msra.mxu0 0.0
      %842 = vmatprep.subr.mxu0 0.0
      %843 = vmatpush1.msra.mxu0 0.0
      %844 = vmatprep.subr.mxu0 0.0
      %845 = vmatpush1.msra.mxu0 0.0
      %846 = vmatprep.subr.mxu0 0.0
      %847 = vmatpush1.msra.mxu0 0.0
      %848 = vmatprep.subr.mxu0 0.0
      %849 = vmatpush1.msra.mxu0 0.0
      %850 = vmatprep.subr.mxu0 0.0
      %851 = vmatpush1.msra.mxu0 0.0
      %852 = vmatprep.subr.mxu0 0.0
      %853 = vmatpush1.msra.mxu0 0.0
      %854 = vmatprep.subr.mxu0 %v822
      %855 = vmatpush1.msra.mxu0 %v820
      %856 = vmatprep.subr.mxu0 0.0
      %857 = vmatpush2.msra.mxu0 0.0
      %858 = vmatprep.subr.mxu0 0.0
      %859 = vmatpush2.msra.mxu0 0.0
      %860 = vmatprep.subr.mxu0 0.0
      %861 = vmatpush2.msra.mxu0 0.0
      %862 = vmatprep.subr.mxu0 0.0
      %863 = vmatpush2.msra.mxu0 0.0
      %864 = vmatprep.subr.mxu0 0.0
      %865 = vmatpush2.msra.mxu0 0.0
      %866 = vmatprep.subr.mxu0 0.0
      %867 = vmatpush2.msra.mxu0 0.0
      %868 = vmatprep.subr.mxu0 0.0
      %869 = vmatpush2.msra.mxu0 0.0
      %870 = vmatprep.subr.mxu0 0.0
      %871 = vmatpush2.msra.mxu0 0.0
      %872 = vmatprep.subr.mxu0 0.0
      %873 = vmatpush2.msra.mxu0 0.0
      %874 = vmatprep.subr.mxu0 0.0
      %875 = vmatpush2.msra.mxu0 0.0
      %876 = vmatprep.subr.mxu0 0.0
      %877 = vmatpush2.msra.mxu0 0.0
      %878 = vmatprep.subr.mxu0 0.0
      %879 = vmatpush2.msra.mxu0 0.0
      %880 = vmatprep.subr.mxu0 0.0
      %881 = vmatpush2.msra.mxu0 0.0
      %882 = vmatprep.subr.mxu0 0.0
      %883 = vmatpush2.msra.mxu0 0.0
      %884 = vmatprep.subr.mxu0 0.0
      %885 = vmatpush2.msra.mxu0 0.0
      %886 = vmatprep.subr.mxu0 0.0
      %887 = vmatpush2.msra.mxu0 0.0
      %888 = vmatprep.mubr.f32.mxu0 0.0
      %889 = vmatmul.mubr.f32.gmra.mxu0 %v818
      %v890 = vpop.f32.mrf.mxu0
      %v891 = vadd.f32 0.0, %v890
      %v892 = vpop.f32.mrf.mxu0
      %v893 = vadd.f32 0.0, %v892
      %894 = vdwg.mxu0
      %v895 = vadd.f32 %v792, %v891
      %v896 = vadd.f32 %v793, %v893
      %s897 = scalar_lea.vmem %s1, 56
      %v898 = vld [vmem:[%s897] sm:$0xff]
      %899 = vrot.lane.b32.xlu0 %v171, 95
      %v900 = vpop.permute.xlu0 %899
      %901 = vrot.lane.b32.xlu0 %v203, 95
      %v902 = vpop.permute.xlu0 %901
      %903 = vrot.lane.b32.xlu0 %v172, 95
      %v904 = vpop.permute.xlu0 %903
      %vm905 = vcmask 777216
      %v906 = vsel %vm905, %v900, %v902
      %v907 = vsel %vm905, %v902, %v904
      %v909 = vsel %vm213, %v898, 0
      %v911 = vsel %vm217, %v906, 0
      %v913 = vsel %vm217, %v907, 0
      %915 = vmatprep.subr.mxu0 0.0
      %916 = vmatpush1.msra.mxu0 0.0
      %917 = vmatprep.subr.mxu0 0.0
      %918 = vmatpush1.msra.mxu0 0.0
      %919 = vmatprep.subr.mxu0 0.0
      %920 = vmatpush1.msra.mxu0 0.0
      %921 = vmatprep.subr.mxu0 0.0
      %922 = vmatpush1.msra.mxu0 0.0
      %923 = vmatprep.subr.mxu0 0.0
      %924 = vmatpush1.msra.mxu0 0.0
      %925 = vmatprep.subr.mxu0 0.0
      %926 = vmatpush1.msra.mxu0 0.0
      %927 = vmatprep.subr.mxu0 0.0
      %928 = vmatpush1.msra.mxu0 0.0
      %929 = vmatprep.subr.mxu0 0.0
      %930 = vmatpush1.msra.mxu0 0.0
      %931 = vmatprep.subr.mxu0 0.0
      %932 = vmatpush1.msra.mxu0 0.0
      %933 = vmatprep.subr.mxu0 0.0
      %934 = vmatpush1.msra.mxu0 0.0
      %935 = vmatprep.subr.mxu0 0.0
      %936 = vmatpush1.msra.mxu0 0.0
      %937 = vmatprep.subr.mxu0 0.0
      %938 = vmatpush1.msra.mxu0 0.0
      %939 = vmatprep.subr.mxu0 0.0
      %940 = vmatpush1.msra.mxu0 0.0
      %941 = vmatprep.subr.mxu0 0.0
      %942 = vmatpush1.msra.mxu0 0.0
      %943 = vmatprep.subr.mxu0 0.0
      %944 = vmatpush1.msra.mxu0 0.0
      %945 = vmatprep.subr.mxu0 %v913
      %946 = vmatpush1.msra.mxu0 %v911
      %947 = vmatprep.subr.mxu0 0.0
      %948 = vmatpush2.msra.mxu0 0.0
      %949 = vmatprep.subr.mxu0 0.0
      %950 = vmatpush2.msra.mxu0 0.0
      %951 = vmatprep.subr.mxu0 0.0
      %952 = vmatpush2.msra.mxu0 0.0
      %953 = vmatprep.subr.mxu0 0.0
      %954 = vmatpush2.msra.mxu0 0.0
      %955 = vmatprep.subr.mxu0 0.0
      %956 = vmatpush2.msra.mxu0 0.0
      %957 = vmatprep.subr.mxu0 0.0
      %958 = vmatpush2.msra.mxu0 0.0
      %959 = vmatprep.subr.mxu0 0.0
      %960 = vmatpush2.msra.mxu0 0.0
      %961 = vmatprep.subr.mxu0 0.0
      %962 = vmatpush2.msra.mxu0 0.0
      %963 = vmatprep.subr.mxu0 0.0
      %964 = vmatpush2.msra.mxu0 0.0
      %965 = vmatprep.subr.mxu0 0.0
      %966 = vmatpush2.msra.mxu0 0.0
      %967 = vmatprep.subr.mxu0 0.0
      %968 = vmatpush2.msra.mxu0 0.0
      %969 = vmatprep.subr.mxu0 0.0
      %970 = vmatpush2.msra.mxu0 0.0
      %971 = vmatprep.subr.mxu0 0.0
      %972 = vmatpush2.msra.mxu0 0.0
      %973 = vmatprep.subr.mxu0 0.0
      %974 = vmatpush2.msra.mxu0 0.0
      %975 = vmatprep.subr.mxu0 0.0
      %976 = vmatpush2.msra.mxu0 0.0
      %977 = vmatprep.subr.mxu0 0.0
      %978 = vmatpush2.msra.mxu0 0.0
      %979 = vmatprep.mubr.f32.mxu0 0.0
      %980 = vmatmul.mubr.f32.gmra.mxu0 %v909
      %v981 = vpop.f32.mrf.mxu0
      %v982 = vadd.f32 0.0, %v981
      %v983 = vpop.f32.mrf.mxu0
      %v984 = vadd.f32 0.0, %v983
      %985 = vdwg.mxu0
      %v986 = vadd.f32 %v895, %v982
      %v987 = vadd.f32 %v896, %v984
      %988 = vrot.lane.b32.xlu0 %v393, 34
      %v989 = vpop.permute.xlu0 %988
      %v990 = vrot.slane %v989, 4
      %vm991 = vcmask 277504
      %v992 = vsel %vm991, %v990, %v989
      %v995 = vmul.f32 %v171, %v992
      %v996 = vmul.f32 %v172, %v990
      %s997 = scalar_lea.vmem %s1, 64
      %v998 = vld [vmem:[%s997] sm:$0xff]
      %v1001 = vcombine.high %v995, %v995
      %1002 = vrot.lane.b32.xlu0 %v995, 94
      %v1003 = vpop.permute.xlu0 %1002
      %1004 = vrot.lane.b32.xlu0 %v1001, 94
      %v1005 = vpop.permute.xlu0 %1004
      %1006 = vrot.lane.b32.xlu0 %v996, 94
      %v1007 = vpop.permute.xlu0 %1006
      %vm1008 = vcmask 769024
      %v1009 = vsel %vm1008, %v1003, %v1005
      %v1010 = vsel %vm1008, %v1005, %v1007
      %v1012 = vsel %vm213, %v998, 0
      %v1014 = vsel %vm217, %v1009, 0
      %v1016 = vsel %vm217, %v1010, 0
      %1018 = vmatprep.subr.mxu0 0.0
      %1019 = vmatpush1.msra.mxu0 0.0
      %1020 = vmatprep.subr.mxu0 0.0
      %1021 = vmatpush1.msra.mxu0 0.0
      %1022 = vmatprep.subr.mxu0 0.0
      %1023 = vmatpush1.msra.mxu0 0.0
      %1024 = vmatprep.subr.mxu0 0.0
      %1025 = vmatpush1.msra.mxu0 0.0
      %1026 = vmatprep.subr.mxu0 0.0
      %1027 = vmatpush1.msra.mxu0 0.0
      %1028 = vmatprep.subr.mxu0 0.0
      %1029 = vmatpush1.msra.mxu0 0.0
      %1030 = vmatprep.subr.mxu0 0.0
      %1031 = vmatpush1.msra.mxu0 0.0
      %1032 = vmatprep.subr.mxu0 0.0
      %1033 = vmatpush1.msra.mxu0 0.0
      %1034 = vmatprep.subr.mxu0 0.0
      %1035 = vmatpush1.msra.mxu0 0.0
      %1036 = vmatprep.subr.mxu0 0.0
      %1037 = vmatpush1.msra.mxu0 0.0
      %1038 = vmatprep.subr.mxu0 0.0
      %1039 = vmatpush1.msra.mxu0 0.0
      %1040 = vmatprep.subr.mxu0 0.0
      %1041 = vmatpush1.msra.mxu0 0.0
      %1042 = vmatprep.subr.mxu0 0.0
      %1043 = vmatpush1.msra.mxu0 0.0
      %1044 = vmatprep.subr.mxu0 0.0
      %1045 = vmatpush1.msra.mxu0 0.0
      %1046 = vmatprep.subr.mxu0 0.0
      %1047 = vmatpush1.msra.mxu0 0.0
      %1048 = vmatprep.subr.mxu0 %v1016
      %1049 = vmatpush1.msra.mxu0 %v1014
      %1050 = vmatprep.subr.mxu0 0.0
      %1051 = vmatpush2.msra.mxu0 0.0
      %1052 = vmatprep.subr.mxu0 0.0
      %1053 = vmatpush2.msra.mxu0 0.0
      %1054 = vmatprep.subr.mxu0 0.0
      %1055 = vmatpush2.msra.mxu0 0.0
      %1056 = vmatprep.subr.mxu0 0.0
      %1057 = vmatpush2.msra.mxu0 0.0
      %1058 = vmatprep.subr.mxu0 0.0
      %1059 = vmatpush2.msra.mxu0 0.0
      %1060 = vmatprep.subr.mxu0 0.0
      %1061 = vmatpush2.msra.mxu0 0.0
      %1062 = vmatprep.subr.mxu0 0.0
      %1063 = vmatpush2.msra.mxu0 0.0
      %1064 = vmatprep.subr.mxu0 0.0
      %1065 = vmatpush2.msra.mxu0 0.0
      %1066 = vmatprep.subr.mxu0 0.0
      %1067 = vmatpush2.msra.mxu0 0.0
      %1068 = vmatprep.subr.mxu0 0.0
      %1069 = vmatpush2.msra.mxu0 0.0
      %1070 = vmatprep.subr.mxu0 0.0
      %1071 = vmatpush2.msra.mxu0 0.0
      %1072 = vmatprep.subr.mxu0 0.0
      %1073 = vmatpush2.msra.mxu0 0.0
      %1074 = vmatprep.subr.mxu0 0.0
      %1075 = vmatpush2.msra.mxu0 0.0
      %1076 = vmatprep.subr.mxu0 0.0
      %1077 = vmatpush2.msra.mxu0 0.0
      %1078 = vmatprep.subr.mxu0 0.0
      %1079 = vmatpush2.msra.mxu0 0.0
      %1080 = vmatprep.subr.mxu0 0.0
      %1081 = vmatpush2.msra.mxu0 0.0
      %1082 = vmatprep.mubr.f32.mxu0 0.0
      %1083 = vmatmul.mubr.f32.gmra.mxu0 %v1012
      %v1084 = vpop.f32.mrf.mxu0
      %v1085 = vadd.f32 0.0, %v1084
      %v1086 = vpop.f32.mrf.mxu0
      %v1087 = vadd.f32 0.0, %v1086
      %1088 = vdwg.mxu0
      %v1089 = vadd.f32 %v986, %v1085
      %v1090 = vadd.f32 %v987, %v1087
      %v1091 = vadd.f32 %v1089, %v1090
      %1092 = vadd.xlane.f32.xlu0 %v1091
      %v1093 = vpop.xlane.xlu0 %1092
      %vm1094 = vcmask 7168
      %1095 = vst.msk [vmem:[%s170] sm:$0xff] %vm1094, %v1093
      %v1096 = vmul.f32 %v1089, %v1089
      %v1097 = vmul.f32 %v1090, %v1090
      %v1098 = vadd.f32 %v1096, %v1097
      %1099 = vadd.xlane.f32.xlu0 %v1098
      %v1100 = vpop.xlane.xlu0 %1099
      %s1101 = scalar_lea.vmem %s170, 8
      %1102 = vst.msk [vmem:[%s1101] sm:$0xff] %vm1094, %v1100
      %p1103 = scmp.lt.s32.totalorder %s14, 1
      %s1104 = scalar_select %p1103, %s14, 1
      %s1105 = smul.addr %s1104, 2
      %s1106 = smul.addr %s1105, 8
      %s1107 = scalar_lea.vmem %s3, %s1106
      // Predicated region
      $region33: #{conv_block_forward.2} parent=31 // pred_check
        %p1108 = pneg %p100
      $region34: #{conv_block_forward.2} parent=31 // pred_check_branch
        %1110 = sbr.rel (%p1108) target = $region36
      $region35: #{conv_block_forward.2} parent=31 // pred_region
        _
      $region36: #{conv_block_forward.2} parent=31 // pred_fallthru
        _
    $region32: #{conv_block_forward.2} parent=5 // pred_fallthru
      _
    %p1111 = scmp.le.s32.totalorder 2, %s9
    // Predicated region
    $region37: #{conv_block_forward.2} parent=5 // pred_check
      %p1112 = pneg %p1111
    $region38: #{conv_block_forward.2} parent=5 // pred_check_branch
      %1114 = sbr.rel (%p1112) target = $region40
    $region39: #{conv_block_forward.2} parent=5 // pred_region
      %s1115 = ssub.s32 %s9, 2
      // Predicated region
      $region41: #{conv_block_forward.2} parent=39 // pred_check
        %p1116 = pneg %p106
      $region42: #{conv_block_forward.2} parent=39 // pred_check_branch
        %1118 = sbr.rel (%p1116) target = $region44
      $region43: #{conv_block_forward.2} parent=39 // pred_region
        %p1119 = scmp.lt.s32.totalorder %s15, 1
        %s1120 = scalar_select %p1119, %s15, 1
        %s1121 = smul.addr %s1120, 2
        %s1122 = smul.addr %s1121, 8
        %s1123 = scalar_lea.vmem %s3, %s1122
      $region44: #{conv_block_forward.2} parent=39 // pred_fallthru
        _
    $region40: #{conv_block_forward.2} parent=5 // pred_fallthru
      _
  $region6: #{conv_block_forward.2} parent=0 // loop_footer
    %s13 = sadd.s32 1, %s9
  $region7: #{conv_block_forward.2} parent=0 // loop_footer_branch
    %8 = sbr.rel target = $region3
  $region8: #{conv_block_forward.2} parent=0 // loop_exit
    _

</llo_original>
